<compile_context>
chip_gen: v6e
topology: v6e:2x2x1
jax: 0.10.0
libtpu: 0.0.40
codegen_flags: <defaults>
</compile_context>

<pallas_src>
import math

import numpy as np

import jax
import jax.numpy as jnp
from jax.experimental import pallas as pl
from jax.experimental.pallas import tpu as pltpu

# ---- synthetic, scaled-down "bert-base"-like config ----
VOCAB     = 64
HIDDEN    = 32
N_HEADS   = 2
HEAD_DIM  = HIDDEN // N_HEADS
INTER     = 64          # feed-forward intermediate size
N_LAYERS  = 2
SEQ       = 8           # max_length
BATCH     = 2
N_TARGETS = 4           # len(target_cols)
LN_EPS    = 1e-12       # BERT LayerNorm eps
ROWS      = BATCH * SEQ           # token rows inside the kernel (position-major)
WIDE      = SEQ * N_TARGETS       # width of the "wide" MLP-head matmul
ATT_SCALE = 1.0 / math.sqrt(HEAD_DIM)
NEG_INF   = -1e30
SLAB_COLS = 64                    # common column width of both parameter slabs


# ----------------------------------------------------------------------------
# Static slab layouts (shared by pack_params and the kernel).
# Each entry: name -> (row_offset, n_rows, n_cols).  Row offsets are aligned to
# the dtype's sublane tile (16 for bf16, 8 for f32) so in-kernel slices never
# straddle a tile at an odd offset.
# ----------------------------------------------------------------------------
def _make_layout(align, entries):
    off, r = {}, 0
    for name, rows, cols in entries:
        r = ((r + align - 1) // align) * align
        off[name] = (r, rows, cols)
        r += rows
    r = ((r + align - 1) // align) * align
    return off, r


def _weight_entries():       # bf16 slab: all matmul weights (x @ W layout)
    e = [("word_emb", VOCAB, HIDDEN)]
    for l in range(N_LAYERS):
        for h in range(N_HEADS):
            e += [(f"wq_{l}_{h}", HIDDEN, HIDDEN),   # cols HEAD_DIM: zero pad, scaled
                  (f"wk_{l}_{h}", HIDDEN, HIDDEN),   # cols HEAD_DIM: zero pad
                  (f"wv_{l}_{h}", HIDDEN, HIDDEN)]   # Wv_h @ Wo_h (Wo folded in)
        e += [(f"w1_{l}", HIDDEN, INTER), (f"w2_{l}", INTER, HIDDEN)]
    e += [("fc_wide",     HIDDEN, WIDE),   # flatten-head weight, (H, SEQ*NT)
          ("head_gather", BATCH,  ROWS),   # G: 0/1 batch-row gather
          ("head_select", WIDE,   N_TARGETS)]  # S: 0/1 target-column selector
    return e


def _param_entries():        # f32 slab: biases, LayerNorm params, constants
    e = [("pos_rows", ROWS, HIDDEN), ("emb_g", 1, HIDDEN), ("emb_b", 1, HIDDEN)]
    for l in range(N_LAYERS):
        for h in range(N_HEADS):
            e += [(f"bq_{l}_{h}", 1, HIDDEN), (f"bk_{l}_{h}", 1, HIDDEN),
                  (f"bv_{l}_{h}", 1, HIDDEN)]
        e += [(f"g1_{l}", 1, HIDDEN), (f"be1_{l}", 1, HIDDEN),
              (f"b1_{l}", 1, INTER),  (f"b2_{l}", 1, HIDDEN),
              (f"g2_{l}", 1, HIDDEN), (f"be2_{l}", 1, HIDDEN)]
    e += [("head_mask", ROWS, WIDE), ("fc_b", 1, N_TARGETS)]
    return e


W_OFF, W_TOTAL_ROWS = _make_layout(16, _weight_entries())
F_OFF, F_TOTAL_ROWS = _make_layout(8, _param_entries())


# ----------------------------------------------------------------------------
# The single fused kernel: embeddings -> N_LAYERS encoder layers -> MLP head
# ----------------------------------------------------------------------------
def fused_bert_kernel(ids_ref, w_ref, f_ref, o_ref):
    f32, bf16 = jnp.float32, jnp.bfloat16

    def wload(name):                       # static slice out of the bf16 slab
        r0, nr, nc = W_OFF[name]
        return w_ref[r0:r0 + nr, 0:nc]

    def fload(name):                       # static slice out of the f32 slab
        r0, nr, nc = F_OFF[name]
        return f_ref[r0:r0 + nr, 0:nc]

    def mmb(a, b):                         # bf16 MXU operands, f32 accumulation
        return jnp.dot(a, b, preferred_element_type=f32)

    def ln(x, gname, bname):
        mu = jnp.mean(x, axis=-1, keepdims=True)
        var = jnp.mean(jnp.square(x - mu), axis=-1, keepdims=True)
        return (x - mu) * jax.lax.rsqrt(var + LN_EPS) * fload(gname) + fload(bname)

    # ---- embeddings: token gather as one-hot @ table (MXU) + precomputed
    #      position/token-type rows, then embedding LayerNorm.
    ids_col = ids_ref[...]                                            # (ROWS, 1) int32
    vocab_iota = jax.lax.broadcasted_iota(jnp.int32, (ROWS, VOCAB), 1)
    tok_onehot = (vocab_iota == ids_col).astype(bf16)                 # built in bf16
    x = mmb(tok_onehot, wload("word_emb")) + fload("pos_rows")        # (ROWS, HIDDEN) f32
    x = ln(x, "emb_g", "emb_b")

    # Block-diagonal bias generated in-kernel: rows of different batch items
    # never attend (rows are position-major, so batch(row) = row % BATCH).
    ri = jax.lax.broadcasted_iota(jnp.int32, (ROWS, ROWS), 0)
    ci = jax.lax.broadcasted_iota(jnp.int32, (ROWS, ROWS), 1)
    attn_bias = jnp.where((ri % BATCH) == (ci % BATCH), 0.0, NEG_INF).astype(f32)

    # ---- transformer encoder stack (statically unrolled) ----
    for l in range(N_LAYERS):
        xb = x.astype(bf16)                # hoisted: single cast reused by all heads
        attn = jnp.zeros((ROWS, HIDDEN), f32)
        for h in range(N_HEADS):           # per-head weights: no lane slice / concat
            # ATT_SCALE is folded into wq/bq; Wo is folded into wv/bv at pack time.
            qh = mmb(xb, wload(f"wq_{l}_{h}")) + fload(f"bq_{l}_{h}")  # (ROWS, HIDDEN)
            kh = mmb(xb, wload(f"wk_{l}_{h}")) + fload(f"bk_{l}_{h}")
            vh = mmb(xb, wload(f"wv_{l}_{h}")) + fload(f"bv_{l}_{h}")
            s = jax.lax.dot_general(
                qh.astype(bf16), kh.astype(bf16),
                (((1,), (1,)), ((), ())),
                preferred_element_type=f32) + attn_bias                # (ROWS, ROWS)
            m = jnp.max(s, axis=-1, keepdims=True)
            p = jnp.exp(s - m)
            p = p * pl.reciprocal(jnp.sum(p, axis=-1, keepdims=True), approx=True)
            attn = attn + mmb(p.astype(bf16), vh.astype(bf16))         # P_h @ (x Wv_h Wo_h)
        x = ln(x + attn, f"g1_{l}", f"be1_{l}")

        ff = mmb(x.astype(bf16), wload(f"w1_{l}")) + fload(f"b1_{l}")
        # TODO(synk): HF BERT default is the exact erf GELU; tanh approximation used here.
        ff = jax.nn.gelu(ff, approximate=True)
        ff = mmb(ff.astype(bf16), wload(f"w2_{l}")) + fload(f"b2_{l}")
        x = ln(x + ff, f"g2_{l}", f"be2_{l}")

    # ---- MLP head: Linear over flatten(L*H) as three lane-wide matmuls.
    #      out = G @ ((x @ W_wide) * M) @ S + fc_b
    y = mmb(x.astype(bf16), wload("fc_wide")) * fload("head_mask")     # (ROWS, WIDE)
    z = mmb(y.astype(bf16), wload("head_select"))                      # (ROWS, N_TARGETS)
    out = mmb(wload("head_gather"), z.astype(bf16)) + fload("fc_b")    # (BATCH, N_TARGETS)
    # TODO(synk): training-mode dropout (p=DROPOUT) not applied; eval-mode identity.
    o_ref[...] = out.astype(o_ref.dtype)


# ----------------------------------------------------------------------------
# Parameters (deterministic synthetic init — NOT pretrained weights)
# ----------------------------------------------------------------------------
def _init(key, shape, scale=0.02):
    return scale * jax.random.normal(key, shape, dtype=jnp.float32)


def init_params(key):
    """Synthetic weights in the standard (x @ W) layout."""
    keys = iter(jax.random.split(key, 32))
    nk = lambda: next(keys)
    p = {
        "word_emb": _init(nk(), (VOCAB, HIDDEN)),
        "pos_emb":  _init(nk(), (SEQ, HIDDEN)),
        "type_emb": _init(nk(), (2, HIDDEN)),
        "emb_ln_g": jnp.ones((HIDDEN,), jnp.float32),
        "emb_ln_b": jnp.zeros((HIDDEN,), jnp.float32),
        # fc: Linear(HIDDEN * max_length -> len(target_cols))
        "fc_w": _init(nk(), (SEQ * HIDDEN, N_TARGETS)),
        "fc_b": jnp.zeros((N_TARGETS,), jnp.float32),
        "layers": [],
    }
    for _ in range(N_LAYERS):
        p["layers"].append({
            "wq": _init(nk(), (HIDDEN, HIDDEN)), "bq": jnp.zeros((HIDDEN,), jnp.float32),
            "wk": _init(nk(), (HIDDEN, HIDDEN)), "bk": jnp.zeros((HIDDEN,), jnp.float32),
            "wv": _init(nk(), (HIDDEN, HIDDEN)), "bv": jnp.zeros((HIDDEN,), jnp.float32),
            "wo": _init(nk(), (HIDDEN, HIDDEN)), "bo": jnp.zeros((HIDDEN,), jnp.float32),
            "g1": jnp.ones((HIDDEN,), jnp.float32), "be1": jnp.zeros((HIDDEN,), jnp.float32),
            "w1": _init(nk(), (HIDDEN, INTER)),  "b1": jnp.zeros((INTER,), jnp.float32),
            "w2": _init(nk(), (INTER, HIDDEN)),  "b2": jnp.zeros((HIDDEN,), jnp.float32),
            "g2": jnp.ones((HIDDEN,), jnp.float32), "be2": jnp.zeros((HIDDEN,), jnp.float32),
        })
    return p


def pack_params(p):
    """Pack everything into two slabs (one DMA each):
       * bf16 weight slab: word_emb, per-(layer,head) Wq/Wk (zero-padded to HIDDEN
         cols, ATT_SCALE folded into Wq), Wv@Wo, FFN weights, MLP-head W_wide and
         the 0/1 gather/select matrices,
       * f32 param slab: pre-expanded position+type rows, all biases (bo folded
         into the head-0 value bias), LayerNorm params, head mask, fc bias.
       Done offline (outside the jitted forward)."""
    g = lambda a: np.asarray(a, np.float32)
    wslab = np.zeros((W_TOTAL_ROWS, SLAB_COLS), np.float32)
    fslab = np.zeros((F_TOTAL_ROWS, SLAB_COLS), np.float32)

    def wput(name, val):
        r0, nr, nc = W_OFF[name]
        wslab[r0:r0 + nr, :nc] = val

    def fput(name, val):
        r0, nr, nc = F_OFF[name]
        fslab[r0:r0 + nr, :nc] = val

    wput("word_emb", g(p["word_emb"]))
    pos_type = g(p["pos_emb"]) + g(p["type_emb"])[0][None, :]            # (SEQ, H)
    fput("pos_rows", np.repeat(pos_type, BATCH, axis=0))                 # position-major
    fput("emb_g", g(p["emb_ln_g"])[None, :])
    fput("emb_b", g(p["emb_ln_b"])[None, :])

    for l, lp in enumerate(p["layers"]):
        wq, wk, wv, wo = g(lp["wq"]), g(lp["wk"]), g(lp["wv"]), g(lp["wo"])
        bq, bk, bv, bo = g(lp["bq"]), g(lp["bk"]), g(lp["bv"]), g(lp["bo"])
        for h in range(N_HEADS):
            c0, c1 = h * HEAD_DIM, (h + 1) * HEAD_DIM
            wq_pad = np.zeros((HIDDEN, HIDDEN), np.float32)
            wq_pad[:, :HEAD_DIM] = wq[:, c0:c1] * ATT_SCALE              # scale folded
            wk_pad = np.zeros((HIDDEN, HIDDEN), np.float32)
            wk_pad[:, :HEAD_DIM] = wk[:, c0:c1]
            wput(f"wq_{l}_{h}", wq_pad)
            wput(f"wk_{l}_{h}", wk_pad)
            wput(f"wv_{l}_{h}", wv[:, c0:c1] @ wo[c0:c1, :])             # Wo folded

            bq_pad = np.zeros((1, HIDDEN), np.float32)
            bq_pad[0, :HEAD_DIM] = bq[c0:c1] * ATT_SCALE
            bk_pad = np.zeros((1, HIDDEN), np.float32)
            bk_pad[0, :HEAD_DIM] = bk[c0:c1]
            bv_fold = (bv[c0:c1] @ wo[c0:c1, :])[None, :]
            if h == 0:
                bv_fold = bv_fold + bo[None, :]                          # bo folded once
            fput(f"bq_{l}_{h}", bq_pad)
            fput(f"bk_{l}_{h}", bk_pad)
            fput(f"bv_{l}_{h}", bv_fold)

        wput(f"w1_{l}", g(lp["w1"]))
        wput(f"w2_{l}", g(lp["w2"]))
        fput(f"g1_{l}", g(lp["g1"])[None, :]); fput(f"be1_{l}", g(lp["be1"])[None, :])
        fput(f"b1_{l}", g(lp["b1"])[None, :]); fput(f"b2_{l}", g(lp["b2"])[None, :])
        fput(f"g2_{l}", g(lp["g2"])[None, :]); fput(f"be2_{l}", g(lp["be2"])[None, :])

    # MLP head: W_wide[h, pos*NT + t] = fc_w[pos*HIDDEN + h, t]
    fc_w = g(p["fc_w"])
    wput("fc_wide", fc_w.reshape(SEQ, HIDDEN, N_TARGETS)
                        .transpose(1, 0, 2).reshape(HIDDEN, WIDE))
    fput("fc_b", g(p["fc_b"])[None, :])

    r = np.arange(ROWS); c = np.arange(WIDE)
    b = np.arange(BATCH); t = np.arange(N_TARGETS)
    fput("head_mask",   (r[:, None] // BATCH == c[None, :] // N_TARGETS).astype(np.float32))
    wput("head_gather", (r[None, :] % BATCH == b[:, None]).astype(np.float32))
    wput("head_select", (c[:, None] % N_TARGETS == t[None, :]).astype(np.float32))

    return {"wslab": jnp.asarray(wslab, jnp.bfloat16),
            "fslab": jnp.asarray(fslab, jnp.float32)}


# ----------------------------------------------------------------------------
# Full forward pass (BERTClass.forward equivalent, MLP head, not multihead)
# ----------------------------------------------------------------------------
def bert_class_forward(ids, packed):
    """logits = fc(flatten(BertModel(ids)[0], start_dim=1)); one fused pallas_call
       with 3 input DMAs (ids + bf16 weight slab + f32 param slab)."""
    B, L = ids.shape
    assert B == BATCH and L == SEQ
    # Position-major row order (row i -> position i // B, batch i % B); this is
    # pure layout plumbing on a tiny int array so the head sees contiguous rows.
    ids_col = ids.T.reshape(ROWS, 1).astype(jnp.int32)
    args = [ids_col, packed["wslab"], packed["fslab"]]
    return pl.pallas_call(
        fused_bert_kernel,
        out_shape=jax.ShapeDtypeStruct((B, N_TARGETS), jnp.float32),
        grid=(1,),
        in_specs=[pl.BlockSpec(a.shape, lambda i, _nd=a.ndim: (0,) * _nd) for a in args],
        out_specs=pl.BlockSpec((B, N_TARGETS), lambda i: (0, 0)),
        compiler_params=pltpu.CompilerParams(
            dimension_semantics=("arbitrary",)),
    )(*args)


if __name__ == "__main__":
    key = jax.random.PRNGKey(0)
    kp, kids = jax.random.split(key)
    params = init_params(kp)
    packed = pack_params(params)
    ids = jax.random.randint(kids, (BATCH, SEQ), 0, VOCAB, dtype=jnp.int32)

    fwd = jax.jit(bert_class_forward)
    out = fwd(ids, packed)
    jax.block_until_ready(out)

    assert out.shape == (BATCH, N_TARGETS), out.shape
    assert bool(jnp.all(jnp.isfinite(out)))
    print("KERNEL_OK")
</pallas_src>

<mosaic_0001>
module attributes {stable_mosaic.version = 11 : i64} {
  func.func @fused_bert_kernel(%arg0: i32, %arg1: memref<16x1xi32, #tpu.memory_space<vmem>>, %arg2: memref<720x64xbf16, #tpu.memory_space<vmem>>, %arg3: memref<248x64xf32, #tpu.memory_space<vmem>>, %arg4: memref<2x4xf32, #tpu.memory_space<vmem>>) attributes {dimension_semantics = [#tpu.dimension_semantics<arbitrary>], iteration_bounds = array<i64: 1>, scalar_prefetch = 0 : i64, scratch_operands = 0 : i64, tpu.core_type = #tpu.core_type<tc>, window_params = [{pipeline_mode = #tpu.pipeline_mode<synchronous>, transform_indices = @transform_0, window_bounds = array<i64: 16, 1>}, {pipeline_mode = #tpu.pipeline_mode<synchronous>, transform_indices = @transform_1, window_bounds = array<i64: 720, 64>}, {pipeline_mode = #tpu.pipeline_mode<synchronous>, transform_indices = @transform_2, window_bounds = array<i64: 248, 64>}, {pipeline_mode = #tpu.pipeline_mode<synchronous>, transform_indices = @transform_3, window_bounds = array<i64: 2, 4>}]} {
    %c0 = arith.constant 0 : index
    %c0_0 = arith.constant 0 : index
    %0 = vector.load %arg1[%c0, %c0_0] : memref<16x1xi32, #tpu.memory_space<vmem>>, vector<16x1xi32>
    %1 = tpu.iota {dimensions = array<i32: 1>} : vector<16x64xi32>
    %2 = vector.broadcast %0 : vector<16x1xi32> to vector<16x64xi32>
    %3 = arith.cmpi eq, %1, %2 : vector<16x64xi32>
    %4 = arith.extui %3 : vector<16x64xi1> to vector<16x64xi32>
    %5 = arith.sitofp %4 : vector<16x64xi32> to vector<16x64xf32>
    %6 = arith.truncf %5 : vector<16x64xf32> to vector<16x64xbf16>
    %c0_1 = arith.constant 0 : index
    %c0_2 = arith.constant 0 : index
    %7 = vector.load %arg2[%c0_1, %c0_2] : memref<720x64xbf16, #tpu.memory_space<vmem>>, vector<64x32xbf16>
    %cst = arith.constant dense<0.000000e+00> : vector<16x32xf32>
    %8 = tpu.matmul %6, %7, %cst {dimension_numbers = #tpu.dot_dimension_numbers<[1], [0], [0], [1], [0, 0, 1, 1], [], []>} : vector<16x64xbf16>, vector<64x32xbf16>, vector<16x32xf32> -> vector<16x32xf32>
    %c0_3 = arith.constant 0 : index
    %c0_4 = arith.constant 0 : index
    %9 = vector.load %arg3[%c0_3, %c0_4] : memref<248x64xf32, #tpu.memory_space<vmem>>, vector<16x32xf32>
    %10 = arith.addf %8, %9 : vector<16x32xf32>
    %cst_5 = arith.constant dense<0.000000e+00> : vector<16xf32>
    %11 = vector.multi_reduction <add>, %10, %cst_5 [1] : vector<16x32xf32> to vector<16xf32>
    %12 = vector.shape_cast %11 : vector<16xf32> to vector<16x1xf32>
    %cst_6 = arith.constant 3.200000e+01 : f32
    %13 = vector.broadcast %cst_6 : f32 to vector<16x1xf32>
    %14 = arith.divf %12, %13 : vector<16x1xf32>
    %15 = vector.broadcast %14 : vector<16x1xf32> to vector<16x32xf32>
    %16 = arith.subf %10, %15 : vector<16x32xf32>
    %17 = arith.mulf %16, %16 : vector<16x32xf32>
    %cst_7 = arith.constant dense<0.000000e+00> : vector<16xf32>
    %18 = vector.multi_reduction <add>, %17, %cst_7 [1] : vector<16x32xf32> to vector<16xf32>
    %19 = vector.shape_cast %18 : vector<16xf32> to vector<16x1xf32>
    %cst_8 = arith.constant 3.200000e+01 : f32
    %20 = vector.broadcast %cst_8 : f32 to vector<16x1xf32>
    %21 = arith.divf %19, %20 : vector<16x1xf32>
    %22 = vector.broadcast %14 : vector<16x1xf32> to vector<16x32xf32>
    %23 = arith.subf %10, %22 : vector<16x32xf32>
    %cst_9 = arith.constant 9.99999996E-13 : f32
    %24 = vector.broadcast %cst_9 : f32 to vector<16x1xf32>
    %25 = arith.addf %21, %24 : vector<16x1xf32>
    %26 = math.rsqrt %25 : vector<16x1xf32>
    %27 = vector.broadcast %26 : vector<16x1xf32> to vector<16x32xf32>
    %28 = arith.mulf %23, %27 : vector<16x32xf32>
    %c16 = arith.constant 16 : index
    %c0_10 = arith.constant 0 : index
    %29 = vector.load %arg3[%c16, %c0_10] : memref<248x64xf32, #tpu.memory_space<vmem>>, vector<1x32xf32>
    %30 = vector.broadcast %29 : vector<1x32xf32> to vector<16x32xf32>
    %31 = arith.mulf %28, %30 : vector<16x32xf32>
    %c24 = arith.constant 24 : index
    %c0_11 = arith.constant 0 : index
    %32 = vector.load %arg3[%c24, %c0_11] : memref<248x64xf32, #tpu.memory_space<vmem>>, vector<1x32xf32>
    %33 = vector.broadcast %32 : vector<1x32xf32> to vector<16x32xf32>
    %34 = arith.addf %31, %33 : vector<16x32xf32>
    %35 = tpu.iota {dimensions = array<i32: 0>} : vector<16x16xi32>
    %36 = tpu.iota {dimensions = array<i32: 1>} : vector<16x16xi32>
    %c2_i32 = arith.constant 2 : i32
    %c0_i32 = arith.constant 0 : i32
    %37 = arith.cmpi eq, %c2_i32, %c0_i32 : i32
    %c1_i32 = arith.constant 1 : i32
    %38 = arith.select %37, %c1_i32, %c2_i32 : i32
    %39 = vector.broadcast %38 : i32 to vector<16x16xi32>
    %40 = arith.remsi %35, %39 : vector<16x16xi32>
    %c0_i32_12 = arith.constant 0 : i32
    %41 = vector.broadcast %c0_i32_12 : i32 to vector<16x16xi32>
    %42 = arith.cmpi ne, %40, %41 : vector<16x16xi32>
    %c0_i32_13 = arith.constant 0 : i32
    %43 = vector.broadcast %c0_i32_13 : i32 to vector<16x16xi32>
    %44 = arith.cmpi slt, %40, %43 : vector<16x16xi32>
    %c0_i32_14 = arith.constant 0 : i32
    %45 = arith.cmpi slt, %38, %c0_i32_14 : i32
    %46 = vector.broadcast %45 : i1 to vector<16x16xi1>
    %47 = vector.broadcast %46 : vector<16x16xi1> to vector<16x16xi1>
    %48 = arith.xori %44, %47 : vector<16x16xi1>
    %49 = arith.andi %48, %42 : vector<16x16xi1>
    %50 = vector.broadcast %38 : i32 to vector<16x16xi32>
    %51 = arith.addi %40, %50 : vector<16x16xi32>
    %52 = arith.select %49, %51, %40 : vector<16x16xi1>, vector<16x16xi32>
    %c2_i32_15 = arith.constant 2 : i32
    %c0_i32_16 = arith.constant 0 : i32
    %53 = arith.cmpi eq, %c2_i32_15, %c0_i32_16 : i32
    %c1_i32_17 = arith.constant 1 : i32
    %54 = arith.select %53, %c1_i32_17, %c2_i32_15 : i32
    %55 = vector.broadcast %54 : i32 to vector<16x16xi32>
    %56 = arith.remsi %36, %55 : vector<16x16xi32>
    %c0_i32_18 = arith.constant 0 : i32
    %57 = vector.broadcast %c0_i32_18 : i32 to vector<16x16xi32>
    %58 = arith.cmpi ne, %56, %57 : vector<16x16xi32>
    %c0_i32_19 = arith.constant 0 : i32
    %59 = vector.broadcast %c0_i32_19 : i32 to vector<16x16xi32>
    %60 = arith.cmpi slt, %56, %59 : vector<16x16xi32>
    %c0_i32_20 = arith.constant 0 : i32
    %61 = arith.cmpi slt, %54, %c0_i32_20 : i32
    %62 = vector.broadcast %61 : i1 to vector<16x16xi1>
    %63 = vector.broadcast %62 : vector<16x16xi1> to vector<16x16xi1>
    %64 = arith.xori %60, %63 : vector<16x16xi1>
    %65 = arith.andi %64, %58 : vector<16x16xi1>
    %66 = vector.broadcast %54 : i32 to vector<16x16xi32>
    %67 = arith.addi %56, %66 : vector<16x16xi32>
    %68 = arith.select %65, %67, %56 : vector<16x16xi1>, vector<16x16xi32>
    %69 = arith.cmpi eq, %52, %68 : vector<16x16xi32>
    %cst_21 = arith.constant 0.000000e+00 : f32
    %cst_22 = arith.constant -1.000000e+30 : f32
    %70 = vector.broadcast %cst_21 : f32 to vector<16x16xf32>
    %71 = vector.broadcast %cst_22 : f32 to vector<16x16xf32>
    %72 = arith.select %69, %70, %71 : vector<16x16xi1>, vector<16x16xf32>
    %73 = arith.truncf %34 : vector<16x32xf32> to vector<16x32xbf16>
    %cst_23 = arith.constant 0.000000e+00 : f32
    %74 = vector.broadcast %cst_23 : f32 to vector<16x32xf32>
    %c64 = arith.constant 64 : index
    %c0_24 = arith.constant 0 : index
    %75 = vector.load %arg2[%c64, %c0_24] : memref<720x64xbf16, #tpu.memory_space<vmem>>, vector<32x32xbf16>
    %cst_25 = arith.constant dense<0.000000e+00> : vector<16x32xf32>
    %76 = tpu.matmul %73, %75, %cst_25 {dimension_numbers = #tpu.dot_dimension_numbers<[1], [0], [0], [1], [0, 0, 1, 1], [], []>} : vector<16x32xbf16>, vector<32x32xbf16>, vector<16x32xf32> -> vector<16x32xf32>
    %c32 = arith.constant 32 : index
    %c0_26 = arith.constant 0 : index
    %77 = vector.load %arg3[%c32, %c0_26] : memref<248x64xf32, #tpu.memory_space<vmem>>, vector<1x32xf32>
    %78 = vector.broadcast %77 : vector<1x32xf32> to vector<16x32xf32>
    %79 = arith.addf %76, %78 : vector<16x32xf32>
    %c96 = arith.constant 96 : index
    %c0_27 = arith.constant 0 : index
    %80 = vector.load %arg2[%c96, %c0_27] : memref<720x64xbf16, #tpu.memory_space<vmem>>, vector<32x32xbf16>
    %cst_28 = arith.constant dense<0.000000e+00> : vector<16x32xf32>
    %81 = tpu.matmul %73, %80, %cst_28 {dimension_numbers = #tpu.dot_dimension_numbers<[1], [0], [0], [1], [0, 0, 1, 1], [], []>} : vector<16x32xbf16>, vector<32x32xbf16>, vector<16x32xf32> -> vector<16x32xf32>
    %c40 = arith.constant 40 : index
    %c0_29 = arith.constant 0 : index
    %82 = vector.load %arg3[%c40, %c0_29] : memref<248x64xf32, #tpu.memory_space<vmem>>, vector<1x32xf32>
    %83 = vector.broadcast %82 : vector<1x32xf32> to vector<16x32xf32>
    %84 = arith.addf %81, %83 : vector<16x32xf32>
    %c128 = arith.constant 128 : index
    %c0_30 = arith.constant 0 : index
    %85 = vector.load %arg2[%c128, %c0_30] : memref<720x64xbf16, #tpu.memory_space<vmem>>, vector<32x32xbf16>
    %cst_31 = arith.constant dense<0.000000e+00> : vector<16x32xf32>
    %86 = tpu.matmul %73, %85, %cst_31 {dimension_numbers = #tpu.dot_dimension_numbers<[1], [0], [0], [1], [0, 0, 1, 1], [], []>} : vector<16x32xbf16>, vector<32x32xbf16>, vector<16x32xf32> -> vector<16x32xf32>
    %c48 = arith.constant 48 : index
    %c0_32 = arith.constant 0 : index
    %87 = vector.load %arg3[%c48, %c0_32] : memref<248x64xf32, #tpu.memory_space<vmem>>, vector<1x32xf32>
    %88 = vector.broadcast %87 : vector<1x32xf32> to vector<16x32xf32>
    %89 = arith.addf %86, %88 : vector<16x32xf32>
    %90 = arith.truncf %79 : vector<16x32xf32> to vector<16x32xbf16>
    %91 = arith.truncf %84 : vector<16x32xf32> to vector<16x32xbf16>
    %cst_33 = arith.constant dense<0.000000e+00> : vector<16x16xf32>
    %92 = tpu.matmul %90, %91, %cst_33 {dimension_numbers = #tpu.dot_dimension_numbers<[1], [1], [0], [0], [0, 0, 1, 0], [], []>} : vector<16x32xbf16>, vector<16x32xbf16>, vector<16x16xf32> -> vector<16x16xf32>
    %93 = arith.addf %92, %72 : vector<16x16xf32>
    %cst_34 = arith.constant dense<0xFF800000> : vector<16xf32>
    %94 = vector.multi_reduction <maximumf>, %93, %cst_34 [1] : vector<16x16xf32> to vector<16xf32>
    %95 = vector.shape_cast %94 : vector<16xf32> to vector<16x1xf32>
    %96 = vector.broadcast %95 : vector<16x1xf32> to vector<16x16xf32>
    %97 = arith.subf %93, %96 : vector<16x16xf32>
    %98 = math.exp %97 : vector<16x16xf32>
    %cst_35 = arith.constant dense<0.000000e+00> : vector<16xf32>
    %99 = vector.multi_reduction <add>, %98, %cst_35 [1] : vector<16x16xf32> to vector<16xf32>
    %100 = vector.shape_cast %99 : vector<16xf32> to vector<16x1xf32>
    %101 = tpu.reciprocal %100 {approx = true} : vector<16x1xf32> -> vector<16x1xf32>
    %102 = vector.broadcast %101 : vector<16x1xf32> to vector<16x16xf32>
    %103 = arith.mulf %98, %102 : vector<16x16xf32>
    %104 = arith.truncf %103 : vector<16x16xf32> to vector<16x16xbf16>
    %105 = arith.truncf %89 : vector<16x32xf32> to vector<16x32xbf16>
    %cst_36 = arith.constant dense<0.000000e+00> : vector<16x32xf32>
    %106 = tpu.matmul %104, %105, %cst_36 {dimension_numbers = #tpu.dot_dimension_numbers<[1], [0], [0], [1], [0, 0, 1, 1], [], []>} : vector<16x16xbf16>, vector<16x32xbf16>, vector<16x32xf32> -> vector<16x32xf32>
    %107 = arith.addf %74, %106 : vector<16x32xf32>
    %c160 = arith.constant 160 : index
    %c0_37 = arith.constant 0 : index
    %108 = vector.load %arg2[%c160, %c0_37] : memref<720x64xbf16, #tpu.memory_space<vmem>>, vector<32x32xbf16>
    %cst_38 = arith.constant dense<0.000000e+00> : vector<16x32xf32>
    %109 = tpu.matmul %73, %108, %cst_38 {dimension_numbers = #tpu.dot_dimension_numbers<[1], [0], [0], [1], [0, 0, 1, 1], [], []>} : vector<16x32xbf16>, vector<32x32xbf16>, vector<16x32xf32> -> vector<16x32xf32>
    %c56 = arith.constant 56 : index
    %c0_39 = arith.constant 0 : index
    %110 = vector.load %arg3[%c56, %c0_39] : memref<248x64xf32, #tpu.memory_space<vmem>>, vector<1x32xf32>
    %111 = vector.broadcast %110 : vector<1x32xf32> to vector<16x32xf32>
    %112 = arith.addf %109, %111 : vector<16x32xf32>
    %c192 = arith.constant 192 : index
    %c0_40 = arith.constant 0 : index
    %113 = vector.load %arg2[%c192, %c0_40] : memref<720x64xbf16, #tpu.memory_space<vmem>>, vector<32x32xbf16>
    %cst_41 = arith.constant dense<0.000000e+00> : vector<16x32xf32>
    %114 = tpu.matmul %73, %113, %cst_41 {dimension_numbers = #tpu.dot_dimension_numbers<[1], [0], [0], [1], [0, 0, 1, 1], [], []>} : vector<16x32xbf16>, vector<32x32xbf16>, vector<16x32xf32> -> vector<16x32xf32>
    %c64_42 = arith.constant 64 : index
    %c0_43 = arith.constant 0 : index
    %115 = vector.load %arg3[%c64_42, %c0_43] : memref<248x64xf32, #tpu.memory_space<vmem>>, vector<1x32xf32>
    %116 = vector.broadcast %115 : vector<1x32xf32> to vector<16x32xf32>
    %117 = arith.addf %114, %116 : vector<16x32xf32>
    %c224 = arith.constant 224 : index
    %c0_44 = arith.constant 0 : index
    %118 = vector.load %arg2[%c224, %c0_44] : memref<720x64xbf16, #tpu.memory_space<vmem>>, vector<32x32xbf16>
    %cst_45 = arith.constant dense<0.000000e+00> : vector<16x32xf32>
    %119 = tpu.matmul %73, %118, %cst_45 {dimension_numbers = #tpu.dot_dimension_numbers<[1], [0], [0], [1], [0, 0, 1, 1], [], []>} : vector<16x32xbf16>, vector<32x32xbf16>, vector<16x32xf32> -> vector<16x32xf32>
    %c72 = arith.constant 72 : index
    %c0_46 = arith.constant 0 : index
    %120 = vector.load %arg3[%c72, %c0_46] : memref<248x64xf32, #tpu.memory_space<vmem>>, vector<1x32xf32>
    %121 = vector.broadcast %120 : vector<1x32xf32> to vector<16x32xf32>
    %122 = arith.addf %119, %121 : vector<16x32xf32>
    %123 = arith.truncf %112 : vector<16x32xf32> to vector<16x32xbf16>
    %124 = arith.truncf %117 : vector<16x32xf32> to vector<16x32xbf16>
    %cst_47 = arith.constant dense<0.000000e+00> : vector<16x16xf32>
    %125 = tpu.matmul %123, %124, %cst_47 {dimension_numbers = #tpu.dot_dimension_numbers<[1], [1], [0], [0], [0, 0, 1, 0], [], []>} : vector<16x32xbf16>, vector<16x32xbf16>, vector<16x16xf32> -> vector<16x16xf32>
    %126 = arith.addf %125, %72 : vector<16x16xf32>
    %cst_48 = arith.constant dense<0xFF800000> : vector<16xf32>
    %127 = vector.multi_reduction <maximumf>, %126, %cst_48 [1] : vector<16x16xf32> to vector<16xf32>
    %128 = vector.shape_cast %127 : vector<16xf32> to vector<16x1xf32>
    %129 = vector.broadcast %128 : vector<16x1xf32> to vector<16x16xf32>
    %130 = arith.subf %126, %129 : vector<16x16xf32>
    %131 = math.exp %130 : vector<16x16xf32>
    %cst_49 = arith.constant dense<0.000000e+00> : vector<16xf32>
    %132 = vector.multi_reduction <add>, %131, %cst_49 [1] : vector<16x16xf32> to vector<16xf32>
    %133 = vector.shape_cast %132 : vector<16xf32> to vector<16x1xf32>
    %134 = tpu.reciprocal %133 {approx = true} : vector<16x1xf32> -> vector<16x1xf32>
    %135 = vector.broadcast %134 : vector<16x1xf32> to vector<16x16xf32>
    %136 = arith.mulf %131, %135 : vector<16x16xf32>
    %137 = arith.truncf %136 : vector<16x16xf32> to vector<16x16xbf16>
    %138 = arith.truncf %122 : vector<16x32xf32> to vector<16x32xbf16>
    %cst_50 = arith.constant dense<0.000000e+00> : vector<16x32xf32>
    %139 = tpu.matmul %137, %138, %cst_50 {dimension_numbers = #tpu.dot_dimension_numbers<[1], [0], [0], [1], [0, 0, 1, 1], [], []>} : vector<16x16xbf16>, vector<16x32xbf16>, vector<16x32xf32> -> vector<16x32xf32>
    %140 = arith.addf %107, %139 : vector<16x32xf32>
    %141 = arith.addf %34, %140 : vector<16x32xf32>
    %cst_51 = arith.constant dense<0.000000e+00> : vector<16xf32>
    %142 = vector.multi_reduction <add>, %141, %cst_51 [1] : vector<16x32xf32> to vector<16xf32>
    %143 = vector.shape_cast %142 : vector<16xf32> to vector<16x1xf32>
    %cst_52 = arith.constant 3.200000e+01 : f32
    %144 = vector.broadcast %cst_52 : f32 to vector<16x1xf32>
    %145 = arith.divf %143, %144 : vector<16x1xf32>
    %146 = vector.broadcast %145 : vector<16x1xf32> to vector<16x32xf32>
    %147 = arith.subf %141, %146 : vector<16x32xf32>
    %148 = arith.mulf %147, %147 : vector<16x32xf32>
    %cst_53 = arith.constant dense<0.000000e+00> : vector<16xf32>
    %149 = vector.multi_reduction <add>, %148, %cst_53 [1] : vector<16x32xf32> to vector<16xf32>
    %150 = vector.shape_cast %149 : vector<16xf32> to vector<16x1xf32>
    %cst_54 = arith.constant 3.200000e+01 : f32
    %151 = vector.broadcast %cst_54 : f32 to vector<16x1xf32>
    %152 = arith.divf %150, %151 : vector<16x1xf32>
    %153 = vector.broadcast %145 : vector<16x1xf32> to vector<16x32xf32>
    %154 = arith.subf %141, %153 : vector<16x32xf32>
    %cst_55 = arith.constant 9.99999996E-13 : f32
    %155 = vector.broadcast %cst_55 : f32 to vector<16x1xf32>
    %156 = arith.addf %152, %155 : vector<16x1xf32>
    %157 = math.rsqrt %156 : vector<16x1xf32>
    %158 = vector.broadcast %157 : vector<16x1xf32> to vector<16x32xf32>
    %159 = arith.mulf %154, %158 : vector<16x32xf32>
    %c80 = arith.constant 80 : index
    %c0_56 = arith.constant 0 : index
    %160 = vector.load %arg3[%c80, %c0_56] : memref<248x64xf32, #tpu.memory_space<vmem>>, vector<1x32xf32>
    %161 = vector.broadcast %160 : vector<1x32xf32> to vector<16x32xf32>
    %162 = arith.mulf %159, %161 : vector<16x32xf32>
    %c88 = arith.constant 88 : index
    %c0_57 = arith.constant 0 : index
    %163 = vector.load %arg3[%c88, %c0_57] : memref<248x64xf32, #tpu.memory_space<vmem>>, vector<1x32xf32>
    %164 = vector.broadcast %163 : vector<1x32xf32> to vector<16x32xf32>
    %165 = arith.addf %162, %164 : vector<16x32xf32>
    %166 = arith.truncf %165 : vector<16x32xf32> to vector<16x32xbf16>
    %c256 = arith.constant 256 : index
    %c0_58 = arith.constant 0 : index
    %167 = vector.load %arg2[%c256, %c0_58] : memref<720x64xbf16, #tpu.memory_space<vmem>>, vector<32x64xbf16>
    %cst_59 = arith.constant dense<0.000000e+00> : vector<16x64xf32>
    %168 = tpu.matmul %166, %167, %cst_59 {dimension_numbers = #tpu.dot_dimension_numbers<[1], [0], [0], [1], [0, 0, 1, 1], [], []>} : vector<16x32xbf16>, vector<32x64xbf16>, vector<16x64xf32> -> vector<16x64xf32>
    %c96_60 = arith.constant 96 : index
    %c0_61 = arith.constant 0 : index
    %169 = vector.load %arg3[%c96_60, %c0_61] : memref<248x64xf32, #tpu.memory_space<vmem>>, vector<1x64xf32>
    %170 = vector.broadcast %169 : vector<1x64xf32> to vector<16x64xf32>
    %171 = arith.addf %168, %170 : vector<16x64xf32>
    %172 = arith.mulf %171, %171 : vector<16x64xf32>
    %173 = arith.mulf %171, %172 : vector<16x64xf32>
    %cst_62 = arith.constant 4.471500e-02 : f32
    %174 = vector.broadcast %cst_62 : f32 to vector<16x64xf32>
    %175 = arith.mulf %174, %173 : vector<16x64xf32>
    %176 = arith.addf %171, %175 : vector<16x64xf32>
    %cst_63 = arith.constant 0.797884583 : f32
    %177 = vector.broadcast %cst_63 : f32 to vector<16x64xf32>
    %178 = arith.mulf %177, %176 : vector<16x64xf32>
    %179 = math.tanh %178 : vector<16x64xf32>
    %cst_64 = arith.constant 1.000000e+00 : f32
    %180 = vector.broadcast %cst_64 : f32 to vector<16x64xf32>
    %181 = arith.addf %180, %179 : vector<16x64xf32>
    %cst_65 = arith.constant 5.000000e-01 : f32
    %182 = vector.broadcast %cst_65 : f32 to vector<16x64xf32>
    %183 = arith.mulf %182, %181 : vector<16x64xf32>
    %184 = arith.mulf %171, %183 : vector<16x64xf32>
    %185 = arith.truncf %184 : vector<16x64xf32> to vector<16x64xbf16>
    %c288 = arith.constant 288 : index
    %c0_66 = arith.constant 0 : index
    %186 = vector.load %arg2[%c288, %c0_66] : memref<720x64xbf16, #tpu.memory_space<vmem>>, vector<64x32xbf16>
    %cst_67 = arith.constant dense<0.000000e+00> : vector<16x32xf32>
    %187 = tpu.matmul %185, %186, %cst_67 {dimension_numbers = #tpu.dot_dimension_numbers<[1], [0], [0], [1], [0, 0, 1, 1], [], []>} : vector<16x64xbf16>, vector<64x32xbf16>, vector<16x32xf32> -> vector<16x32xf32>
    %c104 = arith.constant 104 : index
    %c0_68 = arith.constant 0 : index
    %188 = vector.load %arg3[%c104, %c0_68] : memref<248x64xf32, #tpu.memory_space<vmem>>, vector<1x32xf32>
    %189 = vector.broadcast %188 : vector<1x32xf32> to vector<16x32xf32>
    %190 = arith.addf %187, %189 : vector<16x32xf32>
    %191 = arith.addf %165, %190 : vector<16x32xf32>
    %cst_69 = arith.constant dense<0.000000e+00> : vector<16xf32>
    %192 = vector.multi_reduction <add>, %191, %cst_69 [1] : vector<16x32xf32> to vector<16xf32>
    %193 = vector.shape_cast %192 : vector<16xf32> to vector<16x1xf32>
    %cst_70 = arith.constant 3.200000e+01 : f32
    %194 = vector.broadcast %cst_70 : f32 to vector<16x1xf32>
    %195 = arith.divf %193, %194 : vector<16x1xf32>
    %196 = vector.broadcast %195 : vector<16x1xf32> to vector<16x32xf32>
    %197 = arith.subf %191, %196 : vector<16x32xf32>
    %198 = arith.mulf %197, %197 : vector<16x32xf32>
    %cst_71 = arith.constant dense<0.000000e+00> : vector<16xf32>
    %199 = vector.multi_reduction <add>, %198, %cst_71 [1] : vector<16x32xf32> to vector<16xf32>
    %200 = vector.shape_cast %199 : vector<16xf32> to vector<16x1xf32>
    %cst_72 = arith.constant 3.200000e+01 : f32
    %201 = vector.broadcast %cst_72 : f32 to vector<16x1xf32>
    %202 = arith.divf %200, %201 : vector<16x1xf32>
    %203 = vector.broadcast %195 : vector<16x1xf32> to vector<16x32xf32>
    %204 = arith.subf %191, %203 : vector<16x32xf32>
    %cst_73 = arith.constant 9.99999996E-13 : f32
    %205 = vector.broadcast %cst_73 : f32 to vector<16x1xf32>
    %206 = arith.addf %202, %205 : vector<16x1xf32>
    %207 = math.rsqrt %206 : vector<16x1xf32>
    %208 = vector.broadcast %207 : vector<16x1xf32> to vector<16x32xf32>
    %209 = arith.mulf %204, %208 : vector<16x32xf32>
    %c112 = arith.constant 112 : index
    %c0_74 = arith.constant 0 : index
    %210 = vector.load %arg3[%c112, %c0_74] : memref<248x64xf32, #tpu.memory_space<vmem>>, vector<1x32xf32>
    %211 = vector.broadcast %210 : vector<1x32xf32> to vector<16x32xf32>
    %212 = arith.mulf %209, %211 : vector<16x32xf32>
    %c120 = arith.constant 120 : index
    %c0_75 = arith.constant 0 : index
    %213 = vector.load %arg3[%c120, %c0_75] : memref<248x64xf32, #tpu.memory_space<vmem>>, vector<1x32xf32>
    %214 = vector.broadcast %213 : vector<1x32xf32> to vector<16x32xf32>
    %215 = arith.addf %212, %214 : vector<16x32xf32>
    %216 = arith.truncf %215 : vector<16x32xf32> to vector<16x32xbf16>
    %cst_76 = arith.constant 0.000000e+00 : f32
    %217 = vector.broadcast %cst_76 : f32 to vector<16x32xf32>
    %c352 = arith.constant 352 : index
    %c0_77 = arith.constant 0 : index
    %218 = vector.load %arg2[%c352, %c0_77] : memref<720x64xbf16, #tpu.memory_space<vmem>>, vector<32x32xbf16>
    %cst_78 = arith.constant dense<0.000000e+00> : vector<16x32xf32>
    %219 = tpu.matmul %216, %218, %cst_78 {dimension_numbers = #tpu.dot_dimension_numbers<[1], [0], [0], [1], [0, 0, 1, 1], [], []>} : vector<16x32xbf16>, vector<32x32xbf16>, vector<16x32xf32> -> vector<16x32xf32>
    %c128_79 = arith.constant 128 : index
    %c0_80 = arith.constant 0 : index
    %220 = vector.load %arg3[%c128_79, %c0_80] : memref<248x64xf32, #tpu.memory_space<vmem>>, vector<1x32xf32>
    %221 = vector.broadcast %220 : vector<1x32xf32> to vector<16x32xf32>
    %222 = arith.addf %219, %221 : vector<16x32xf32>
    %c384 = arith.constant 384 : index
    %c0_81 = arith.constant 0 : index
    %223 = vector.load %arg2[%c384, %c0_81] : memref<720x64xbf16, #tpu.memory_space<vmem>>, vector<32x32xbf16>
    %cst_82 = arith.constant dense<0.000000e+00> : vector<16x32xf32>
    %224 = tpu.matmul %216, %223, %cst_82 {dimension_numbers = #tpu.dot_dimension_numbers<[1], [0], [0], [1], [0, 0, 1, 1], [], []>} : vector<16x32xbf16>, vector<32x32xbf16>, vector<16x32xf32> -> vector<16x32xf32>
    %c136 = arith.constant 136 : index
    %c0_83 = arith.constant 0 : index
    %225 = vector.load %arg3[%c136, %c0_83] : memref<248x64xf32, #tpu.memory_space<vmem>>, vector<1x32xf32>
    %226 = vector.broadcast %225 : vector<1x32xf32> to vector<16x32xf32>
    %227 = arith.addf %224, %226 : vector<16x32xf32>
    %c416 = arith.constant 416 : index
    %c0_84 = arith.constant 0 : index
    %228 = vector.load %arg2[%c416, %c0_84] : memref<720x64xbf16, #tpu.memory_space<vmem>>, vector<32x32xbf16>
    %cst_85 = arith.constant dense<0.000000e+00> : vector<16x32xf32>
    %229 = tpu.matmul %216, %228, %cst_85 {dimension_numbers = #tpu.dot_dimension_numbers<[1], [0], [0], [1], [0, 0, 1, 1], [], []>} : vector<16x32xbf16>, vector<32x32xbf16>, vector<16x32xf32> -> vector<16x32xf32>
    %c144 = arith.constant 144 : index
    %c0_86 = arith.constant 0 : index
    %230 = vector.load %arg3[%c144, %c0_86] : memref<248x64xf32, #tpu.memory_space<vmem>>, vector<1x32xf32>
    %231 = vector.broadcast %230 : vector<1x32xf32> to vector<16x32xf32>
    %232 = arith.addf %229, %231 : vector<16x32xf32>
    %233 = arith.truncf %222 : vector<16x32xf32> to vector<16x32xbf16>
    %234 = arith.truncf %227 : vector<16x32xf32> to vector<16x32xbf16>
    %cst_87 = arith.constant dense<0.000000e+00> : vector<16x16xf32>
    %235 = tpu.matmul %233, %234, %cst_87 {dimension_numbers = #tpu.dot_dimension_numbers<[1], [1], [0], [0], [0, 0, 1, 0], [], []>} : vector<16x32xbf16>, vector<16x32xbf16>, vector<16x16xf32> -> vector<16x16xf32>
    %236 = arith.addf %235, %72 : vector<16x16xf32>
    %cst_88 = arith.constant dense<0xFF800000> : vector<16xf32>
    %237 = vector.multi_reduction <maximumf>, %236, %cst_88 [1] : vector<16x16xf32> to vector<16xf32>
    %238 = vector.shape_cast %237 : vector<16xf32> to vector<16x1xf32>
    %239 = vector.broadcast %238 : vector<16x1xf32> to vector<16x16xf32>
    %240 = arith.subf %236, %239 : vector<16x16xf32>
    %241 = math.exp %240 : vector<16x16xf32>
    %cst_89 = arith.constant dense<0.000000e+00> : vector<16xf32>
    %242 = vector.multi_reduction <add>, %241, %cst_89 [1] : vector<16x16xf32> to vector<16xf32>
    %243 = vector.shape_cast %242 : vector<16xf32> to vector<16x1xf32>
    %244 = tpu.reciprocal %243 {approx = true} : vector<16x1xf32> -> vector<16x1xf32>
    %245 = vector.broadcast %244 : vector<16x1xf32> to vector<16x16xf32>
    %246 = arith.mulf %241, %245 : vector<16x16xf32>
    %247 = arith.truncf %246 : vector<16x16xf32> to vector<16x16xbf16>
    %248 = arith.truncf %232 : vector<16x32xf32> to vector<16x32xbf16>
    %cst_90 = arith.constant dense<0.000000e+00> : vector<16x32xf32>
    %249 = tpu.matmul %247, %248, %cst_90 {dimension_numbers = #tpu.dot_dimension_numbers<[1], [0], [0], [1], [0, 0, 1, 1], [], []>} : vector<16x16xbf16>, vector<16x32xbf16>, vector<16x32xf32> -> vector<16x32xf32>
    %250 = arith.addf %217, %249 : vector<16x32xf32>
    %c448 = arith.constant 448 : index
    %c0_91 = arith.constant 0 : index
    %251 = vector.load %arg2[%c448, %c0_91] : memref<720x64xbf16, #tpu.memory_space<vmem>>, vector<32x32xbf16>
    %cst_92 = arith.constant dense<0.000000e+00> : vector<16x32xf32>
    %252 = tpu.matmul %216, %251, %cst_92 {dimension_numbers = #tpu.dot_dimension_numbers<[1], [0], [0], [1], [0, 0, 1, 1], [], []>} : vector<16x32xbf16>, vector<32x32xbf16>, vector<16x32xf32> -> vector<16x32xf32>
    %c152 = arith.constant 152 : index
    %c0_93 = arith.constant 0 : index
    %253 = vector.load %arg3[%c152, %c0_93] : memref<248x64xf32, #tpu.memory_space<vmem>>, vector<1x32xf32>
    %254 = vector.broadcast %253 : vector<1x32xf32> to vector<16x32xf32>
    %255 = arith.addf %252, %254 : vector<16x32xf32>
    %c480 = arith.constant 480 : index
    %c0_94 = arith.constant 0 : index
    %256 = vector.load %arg2[%c480, %c0_94] : memref<720x64xbf16, #tpu.memory_space<vmem>>, vector<32x32xbf16>
    %cst_95 = arith.constant dense<0.000000e+00> : vector<16x32xf32>
    %257 = tpu.matmul %216, %256, %cst_95 {dimension_numbers = #tpu.dot_dimension_numbers<[1], [0], [0], [1], [0, 0, 1, 1], [], []>} : vector<16x32xbf16>, vector<32x32xbf16>, vector<16x32xf32> -> vector<16x32xf32>
    %c160_96 = arith.constant 160 : index
    %c0_97 = arith.constant 0 : index
    %258 = vector.load %arg3[%c160_96, %c0_97] : memref<248x64xf32, #tpu.memory_space<vmem>>, vector<1x32xf32>
    %259 = vector.broadcast %258 : vector<1x32xf32> to vector<16x32xf32>
    %260 = arith.addf %257, %259 : vector<16x32xf32>
    %c512 = arith.constant 512 : index
    %c0_98 = arith.constant 0 : index
    %261 = vector.load %arg2[%c512, %c0_98] : memref<720x64xbf16, #tpu.memory_space<vmem>>, vector<32x32xbf16>
    %cst_99 = arith.constant dense<0.000000e+00> : vector<16x32xf32>
    %262 = tpu.matmul %216, %261, %cst_99 {dimension_numbers = #tpu.dot_dimension_numbers<[1], [0], [0], [1], [0, 0, 1, 1], [], []>} : vector<16x32xbf16>, vector<32x32xbf16>, vector<16x32xf32> -> vector<16x32xf32>
    %c168 = arith.constant 168 : index
    %c0_100 = arith.constant 0 : index
    %263 = vector.load %arg3[%c168, %c0_100] : memref<248x64xf32, #tpu.memory_space<vmem>>, vector<1x32xf32>
    %264 = vector.broadcast %263 : vector<1x32xf32> to vector<16x32xf32>
    %265 = arith.addf %262, %264 : vector<16x32xf32>
    %266 = arith.truncf %255 : vector<16x32xf32> to vector<16x32xbf16>
    %267 = arith.truncf %260 : vector<16x32xf32> to vector<16x32xbf16>
    %cst_101 = arith.constant dense<0.000000e+00> : vector<16x16xf32>
    %268 = tpu.matmul %266, %267, %cst_101 {dimension_numbers = #tpu.dot_dimension_numbers<[1], [1], [0], [0], [0, 0, 1, 0], [], []>} : vector<16x32xbf16>, vector<16x32xbf16>, vector<16x16xf32> -> vector<16x16xf32>
    %269 = arith.addf %268, %72 : vector<16x16xf32>
    %cst_102 = arith.constant dense<0xFF800000> : vector<16xf32>
    %270 = vector.multi_reduction <maximumf>, %269, %cst_102 [1] : vector<16x16xf32> to vector<16xf32>
    %271 = vector.shape_cast %270 : vector<16xf32> to vector<16x1xf32>
    %272 = vector.broadcast %271 : vector<16x1xf32> to vector<16x16xf32>
    %273 = arith.subf %269, %272 : vector<16x16xf32>
    %274 = math.exp %273 : vector<16x16xf32>
    %cst_103 = arith.constant dense<0.000000e+00> : vector<16xf32>
    %275 = vector.multi_reduction <add>, %274, %cst_103 [1] : vector<16x16xf32> to vector<16xf32>
    %276 = vector.shape_cast %275 : vector<16xf32> to vector<16x1xf32>
    %277 = tpu.reciprocal %276 {approx = true} : vector<16x1xf32> -> vector<16x1xf32>
    %278 = vector.broadcast %277 : vector<16x1xf32> to vector<16x16xf32>
    %279 = arith.mulf %274, %278 : vector<16x16xf32>
    %280 = arith.truncf %279 : vector<16x16xf32> to vector<16x16xbf16>
    %281 = arith.truncf %265 : vector<16x32xf32> to vector<16x32xbf16>
    %cst_104 = arith.constant dense<0.000000e+00> : vector<16x32xf32>
    %282 = tpu.matmul %280, %281, %cst_104 {dimension_numbers = #tpu.dot_dimension_numbers<[1], [0], [0], [1], [0, 0, 1, 1], [], []>} : vector<16x16xbf16>, vector<16x32xbf16>, vector<16x32xf32> -> vector<16x32xf32>
    %283 = arith.addf %250, %282 : vector<16x32xf32>
    %284 = arith.addf %215, %283 : vector<16x32xf32>
    %cst_105 = arith.constant dense<0.000000e+00> : vector<16xf32>
    %285 = vector.multi_reduction <add>, %284, %cst_105 [1] : vector<16x32xf32> to vector<16xf32>
    %286 = vector.shape_cast %285 : vector<16xf32> to vector<16x1xf32>
    %cst_106 = arith.constant 3.200000e+01 : f32
    %287 = vector.broadcast %cst_106 : f32 to vector<16x1xf32>
    %288 = arith.divf %286, %287 : vector<16x1xf32>
    %289 = vector.broadcast %288 : vector<16x1xf32> to vector<16x32xf32>
    %290 = arith.subf %284, %289 : vector<16x32xf32>
    %291 = arith.mulf %290, %290 : vector<16x32xf32>
    %cst_107 = arith.constant dense<0.000000e+00> : vector<16xf32>
    %292 = vector.multi_reduction <add>, %291, %cst_107 [1] : vector<16x32xf32> to vector<16xf32>
    %293 = vector.shape_cast %292 : vector<16xf32> to vector<16x1xf32>
    %cst_108 = arith.constant 3.200000e+01 : f32
    %294 = vector.broadcast %cst_108 : f32 to vector<16x1xf32>
    %295 = arith.divf %293, %294 : vector<16x1xf32>
    %296 = vector.broadcast %288 : vector<16x1xf32> to vector<16x32xf32>
    %297 = arith.subf %284, %296 : vector<16x32xf32>
    %cst_109 = arith.constant 9.99999996E-13 : f32
    %298 = vector.broadcast %cst_109 : f32 to vector<16x1xf32>
    %299 = arith.addf %295, %298 : vector<16x1xf32>
    %300 = math.rsqrt %299 : vector<16x1xf32>
    %301 = vector.broadcast %300 : vector<16x1xf32> to vector<16x32xf32>
    %302 = arith.mulf %297, %301 : vector<16x32xf32>
    %c176 = arith.constant 176 : index
    %c0_110 = arith.constant 0 : index
    %303 = vector.load %arg3[%c176, %c0_110] : memref<248x64xf32, #tpu.memory_space<vmem>>, vector<1x32xf32>
    %304 = vector.broadcast %303 : vector<1x32xf32> to vector<16x32xf32>
    %305 = arith.mulf %302, %304 : vector<16x32xf32>
    %c184 = arith.constant 184 : index
    %c0_111 = arith.constant 0 : index
    %306 = vector.load %arg3[%c184, %c0_111] : memref<248x64xf32, #tpu.memory_space<vmem>>, vector<1x32xf32>
    %307 = vector.broadcast %306 : vector<1x32xf32> to vector<16x32xf32>
    %308 = arith.addf %305, %307 : vector<16x32xf32>
    %309 = arith.truncf %308 : vector<16x32xf32> to vector<16x32xbf16>
    %c544 = arith.constant 544 : index
    %c0_112 = arith.constant 0 : index
    %310 = vector.load %arg2[%c544, %c0_112] : memref<720x64xbf16, #tpu.memory_space<vmem>>, vector<32x64xbf16>
    %cst_113 = arith.constant dense<0.000000e+00> : vector<16x64xf32>
    %311 = tpu.matmul %309, %310, %cst_113 {dimension_numbers = #tpu.dot_dimension_numbers<[1], [0], [0], [1], [0, 0, 1, 1], [], []>} : vector<16x32xbf16>, vector<32x64xbf16>, vector<16x64xf32> -> vector<16x64xf32>
    %c192_114 = arith.constant 192 : index
    %c0_115 = arith.constant 0 : index
    %312 = vector.load %arg3[%c192_114, %c0_115] : memref<248x64xf32, #tpu.memory_space<vmem>>, vector<1x64xf32>
    %313 = vector.broadcast %312 : vector<1x64xf32> to vector<16x64xf32>
    %314 = arith.addf %311, %313 : vector<16x64xf32>
    %315 = arith.mulf %314, %314 : vector<16x64xf32>
    %316 = arith.mulf %314, %315 : vector<16x64xf32>
    %cst_116 = arith.constant 4.471500e-02 : f32
    %317 = vector.broadcast %cst_116 : f32 to vector<16x64xf32>
    %318 = arith.mulf %317, %316 : vector<16x64xf32>
    %319 = arith.addf %314, %318 : vector<16x64xf32>
    %cst_117 = arith.constant 0.797884583 : f32
    %320 = vector.broadcast %cst_117 : f32 to vector<16x64xf32>
    %321 = arith.mulf %320, %319 : vector<16x64xf32>
    %322 = math.tanh %321 : vector<16x64xf32>
    %cst_118 = arith.constant 1.000000e+00 : f32
    %323 = vector.broadcast %cst_118 : f32 to vector<16x64xf32>
    %324 = arith.addf %323, %322 : vector<16x64xf32>
    %cst_119 = arith.constant 5.000000e-01 : f32
    %325 = vector.broadcast %cst_119 : f32 to vector<16x64xf32>
    %326 = arith.mulf %325, %324 : vector<16x64xf32>
    %327 = arith.mulf %314, %326 : vector<16x64xf32>
    %328 = arith.truncf %327 : vector<16x64xf32> to vector<16x64xbf16>
    %c576 = arith.constant 576 : index
    %c0_120 = arith.constant 0 : index
    %329 = vector.load %arg2[%c576, %c0_120] : memref<720x64xbf16, #tpu.memory_space<vmem>>, vector<64x32xbf16>
    %cst_121 = arith.constant dense<0.000000e+00> : vector<16x32xf32>
    %330 = tpu.matmul %328, %329, %cst_121 {dimension_numbers = #tpu.dot_dimension_numbers<[1], [0], [0], [1], [0, 0, 1, 1], [], []>} : vector<16x64xbf16>, vector<64x32xbf16>, vector<16x32xf32> -> vector<16x32xf32>
    %c200 = arith.constant 200 : index
    %c0_122 = arith.constant 0 : index
    %331 = vector.load %arg3[%c200, %c0_122] : memref<248x64xf32, #tpu.memory_space<vmem>>, vector<1x32xf32>
    %332 = vector.broadcast %331 : vector<1x32xf32> to vector<16x32xf32>
    %333 = arith.addf %330, %332 : vector<16x32xf32>
    %334 = arith.addf %308, %333 : vector<16x32xf32>
    %cst_123 = arith.constant dense<0.000000e+00> : vector<16xf32>
    %335 = vector.multi_reduction <add>, %334, %cst_123 [1] : vector<16x32xf32> to vector<16xf32>
    %336 = vector.shape_cast %335 : vector<16xf32> to vector<16x1xf32>
    %cst_124 = arith.constant 3.200000e+01 : f32
    %337 = vector.broadcast %cst_124 : f32 to vector<16x1xf32>
    %338 = arith.divf %336, %337 : vector<16x1xf32>
    %339 = vector.broadcast %338 : vector<16x1xf32> to vector<16x32xf32>
    %340 = arith.subf %334, %339 : vector<16x32xf32>
    %341 = arith.mulf %340, %340 : vector<16x32xf32>
    %cst_125 = arith.constant dense<0.000000e+00> : vector<16xf32>
    %342 = vector.multi_reduction <add>, %341, %cst_125 [1] : vector<16x32xf32> to vector<16xf32>
    %343 = vector.shape_cast %342 : vector<16xf32> to vector<16x1xf32>
    %cst_126 = arith.constant 3.200000e+01 : f32
    %344 = vector.broadcast %cst_126 : f32 to vector<16x1xf32>
    %345 = arith.divf %343, %344 : vector<16x1xf32>
    %346 = vector.broadcast %338 : vector<16x1xf32> to vector<16x32xf32>
    %347 = arith.subf %334, %346 : vector<16x32xf32>
    %cst_127 = arith.constant 9.99999996E-13 : f32
    %348 = vector.broadcast %cst_127 : f32 to vector<16x1xf32>
    %349 = arith.addf %345, %348 : vector<16x1xf32>
    %350 = math.rsqrt %349 : vector<16x1xf32>
    %351 = vector.broadcast %350 : vector<16x1xf32> to vector<16x32xf32>
    %352 = arith.mulf %347, %351 : vector<16x32xf32>
    %c208 = arith.constant 208 : index
    %c0_128 = arith.constant 0 : index
    %353 = vector.load %arg3[%c208, %c0_128] : memref<248x64xf32, #tpu.memory_space<vmem>>, vector<1x32xf32>
    %354 = vector.broadcast %353 : vector<1x32xf32> to vector<16x32xf32>
    %355 = arith.mulf %352, %354 : vector<16x32xf32>
    %c216 = arith.constant 216 : index
    %c0_129 = arith.constant 0 : index
    %356 = vector.load %arg3[%c216, %c0_129] : memref<248x64xf32, #tpu.memory_space<vmem>>, vector<1x32xf32>
    %357 = vector.broadcast %356 : vector<1x32xf32> to vector<16x32xf32>
    %358 = arith.addf %355, %357 : vector<16x32xf32>
    %359 = arith.truncf %358 : vector<16x32xf32> to vector<16x32xbf16>
    %c640 = arith.constant 640 : index
    %c0_130 = arith.constant 0 : index
    %360 = vector.load %arg2[%c640, %c0_130] : memref<720x64xbf16, #tpu.memory_space<vmem>>, vector<32x32xbf16>
    %cst_131 = arith.constant dense<0.000000e+00> : vector<16x32xf32>
    %361 = tpu.matmul %359, %360, %cst_131 {dimension_numbers = #tpu.dot_dimension_numbers<[1], [0], [0], [1], [0, 0, 1, 1], [], []>} : vector<16x32xbf16>, vector<32x32xbf16>, vector<16x32xf32> -> vector<16x32xf32>
    %c224_132 = arith.constant 224 : index
    %c0_133 = arith.constant 0 : index
    %362 = vector.load %arg3[%c224_132, %c0_133] : memref<248x64xf32, #tpu.memory_space<vmem>>, vector<16x32xf32>
    %363 = arith.mulf %361, %362 : vector<16x32xf32>
    %364 = arith.truncf %363 : vector<16x32xf32> to vector<16x32xbf16>
    %c688 = arith.constant 688 : index
    %c0_134 = arith.constant 0 : index
    %365 = vector.load %arg2[%c688, %c0_134] : memref<720x64xbf16, #tpu.memory_space<vmem>>, vector<32x4xbf16>
    %cst_135 = arith.constant dense<0.000000e+00> : vector<16x4xf32>
    %366 = tpu.matmul %364, %365, %cst_135 {dimension_numbers = #tpu.dot_dimension_numbers<[1], [0], [0], [1], [0, 0, 1, 1], [], []>} : vector<16x32xbf16>, vector<32x4xbf16>, vector<16x4xf32> -> vector<16x4xf32>
    %c672 = arith.constant 672 : index
    %c0_136 = arith.constant 0 : index
    %367 = vector.load %arg2[%c672, %c0_136] : memref<720x64xbf16, #tpu.memory_space<vmem>>, vector<2x16xbf16>
    %368 = arith.truncf %366 : vector<16x4xf32> to vector<16x4xbf16>
    %cst_137 = arith.constant dense<0.000000e+00> : vector<2x4xf32>
    %369 = tpu.matmul %367, %368, %cst_137 {dimension_numbers = #tpu.dot_dimension_numbers<[1], [0], [0], [1], [0, 0, 1, 1], [], []>} : vector<2x16xbf16>, vector<16x4xbf16>, vector<2x4xf32> -> vector<2x4xf32>
    %c240 = arith.constant 240 : index
    %c0_138 = arith.constant 0 : index
    %370 = vector.load %arg3[%c240, %c0_138] : memref<248x64xf32, #tpu.memory_space<vmem>>, vector<1x4xf32>
    %371 = vector.broadcast %370 : vector<1x4xf32> to vector<2x4xf32>
    %372 = arith.addf %369, %371 : vector<2x4xf32>
    %c0_139 = arith.constant 0 : index
    %c0_140 = arith.constant 0 : index
    %373 = vector.load %arg4[%c0_139, %c0_140] : memref<2x4xf32, #tpu.memory_space<vmem>>, vector<2x4xf32>
    tpu.vector_store %arg4[%c0_139, %c0_140], %372 {strides = array<i32>} : memref<2x4xf32, #tpu.memory_space<vmem>>, vector<2x4xf32>,
    return
  }
  func.func @transform_0(%arg0: i32) -> (i32, i32) {
    %c0_i32 = arith.constant 0 : i32
    %c0_i32_0 = arith.constant 0 : i32
    %c0_i32_1 = arith.constant 0 : i32
    return %c0_i32, %c0_i32_0 : i32, i32
  }
  func.func @transform_1(%arg0: i32) -> (i32, i32) {
    %c0_i32 = arith.constant 0 : i32
    %c0_i32_0 = arith.constant 0 : i32
    %c0_i32_1 = arith.constant 0 : i32
    return %c0_i32, %c0_i32_0 : i32, i32
  }
  func.func @transform_2(%arg0: i32) -> (i32, i32) {
    %c0_i32 = arith.constant 0 : i32
    %c0_i32_0 = arith.constant 0 : i32
    %c0_i32_1 = arith.constant 0 : i32
    return %c0_i32, %c0_i32_0 : i32, i32
  }
  func.func @transform_3(%arg0: i32) -> (i32, i32) {
    %c0_i32 = arith.constant 0 : i32
    %c0_i32_0 = arith.constant 0 : i32
    %c0_i32_1 = arith.constant 0 : i32
    return %c0_i32, %c0_i32_0 : i32, i32
  }
}

</mosaic_0001>

<llo_original>
// kernel: bert_class_forward.1
$region0: #{bert_class_forward.1}
  #allocation0 [shape = 'u32[]', space=smem, size = 0x4, offset = 0x4, fixed_abs, tag = 'smem constant byte address 0x4 - core index']
  #allocation1 [shape = 'u32[144,128]{1,0:T(1,128)}', space=vmem, size = 0x12000, scoped, tag = 'internal scratch']
  %s0 = inlined_call_operand.vmem [shape: s32[16,1], index: 0, kind: input, shape index: {}]
  %s1 = inlined_call_operand.vmem [shape: bf16[720,64], index: 1, kind: input, shape index: {}]
  %s2 = inlined_call_operand.vmem [shape: f32[248,64], index: 2, kind: input, shape index: {}]
  %s3 = inlined_call_operand.hbm [shape: f32[2,4], index: 3, kind: output, shape index: {}]
  %s4 = sld [smem:[#allocation0]]
  $region22: #{bert_class_forward.1} parent=0
    _
  %s6 = ssub.s32 1, %s4
  %s7 = scalar_select 0, %s6, %s4
  $region1: #{bert_class_forward.1} parent=0
    #allocation2 [shape = 'u8[1024]{0}', space=vmem, size = 0x400, scoped, tag = 'output window, operand 0, single buffered']
    #allocation3 [shape = 's32[1]{0}', space=sflag, size = 0x4, scoped, tag = 'scoped memory for bert_class_forward.1']
    %8 = vsyncpa [#allocation3], 0
    // Predicated region
    $region2: #{bert_class_forward.1} parent=1 // pred_check
      _
    $region3: #{bert_class_forward.1} parent=1 // pred_check_branch
      %10 = sbr.rel (0) target = $region5
    $region4: #{bert_class_forward.1} parent=1 // pred_region
      _
    $region5: #{bert_class_forward.1} parent=1 // pred_fallthru
      _
    // Predicated region
    $region6: #{bert_class_forward.1} parent=1 // pred_check
      _
    $region7: #{bert_class_forward.1} parent=1 // pred_check_branch
      %12 = sbr.rel (0) target = $region9
    $region8: #{bert_class_forward.1} parent=1 // pred_region
      _
    $region9: #{bert_class_forward.1} parent=1 // pred_fallthru
      _
    // Predicated region
    $region10: #{bert_class_forward.1} parent=1 // pred_check
      _
    $region11: #{bert_class_forward.1} parent=1 // pred_check_branch
      %14 = sbr.rel (0) target = $region13
    $region12: #{bert_class_forward.1} parent=1 // pred_region
      _
    $region13: #{bert_class_forward.1} parent=1 // pred_fallthru
      _
    %v16 = vld [vmem:[%s0] sm:$0xff]
    %v17 = vld [vmem:[%s0 + $0x8] sm:$0xff]
    %v18 = vlaneseq
    %v19 = vand.u32 %v18, 127
    %20 = vset.pattern.permute.xlu0 0
    %21 = vperm.xlu0 %20, %v16
    %v22 = vpop.permute.xlu0 %21
    %23 = vset.pattern.permute.xlu0 0
    %24 = vperm.xlu0 %23, %v17
    %v25 = vpop.permute.xlu0 %24
    %vm26 = vcmp.eq.s32.totalorder %v19, %v22
    %vm27 = vcmp.eq.s32.totalorder %v19, %v25
    %v28 = vsel %vm26, 1, 0
    %v29 = vsel %vm27, 1, 0
    %v30 = vcvt.s32.f32 %v28
    %v31 = vcvt.s32.f32 %v29
    %v32 = vpack.c.bf16 %v31, %v30
    %v33 = vld [vmem:[%s1] sm:$0xf]
    %v34 = vld [vmem:[%s1 + $0x4] sm:$0xf]
    %v35 = vld [vmem:[%s1 + $0x8] sm:$0xf]
    %v36 = vld [vmem:[%s1 + $0xc] sm:$0xf]
    %v37 = vld [vmem:[%s1 + $0x10] sm:$0xf]
    %v38 = vld [vmem:[%s1 + $0x14] sm:$0xf]
    %v39 = vld [vmem:[%s1 + $0x18] sm:$0xf]
    %v40 = vld [vmem:[%s1 + $0x1c] sm:$0xf]
    %v41 = vld [vmem:[%s2] sm:$0xff]
    %v42 = vld [vmem:[%s2 + $0x8] sm:$0xff]
    %v51 = vunpack.c.l.b16 %v33
    %v52 = vunpack.c.l.b16 %v34
    %v53 = vunpack.c.l.b16 %v35
    %v54 = vunpack.c.l.b16 %v36
    %v55 = vunpack.c.l.b16 %v37
    %v56 = vunpack.c.l.b16 %v38
    %v57 = vunpack.c.l.b16 %v39
    %v58 = vunpack.c.l.b16 %v40
    %v59 = vpack.c.b16 %v52, %v51
    %v60 = vpack.c.b16 %v54, %v53
    %v61 = vpack.c.b16 %v56, %v55
    %v62 = vpack.c.b16 %v58, %v57
    %vm67 = vcmask 523264
    %v69 = vsel %vm67, %v32, 0
    %71 = vmatprep.subr.bf16.mxu0 0
    %72 = vmatpush1.bf16.msra.mxu0 0
    %73 = vmatprep.subr.bf16.mxu0 0
    %74 = vmatpush1.bf16.msra.mxu0 0
    %75 = vmatprep.subr.bf16.mxu0 0
    %76 = vmatpush1.bf16.msra.mxu0 0
    %77 = vmatprep.subr.bf16.mxu0 0
    %78 = vmatpush1.bf16.msra.mxu0 0
    %79 = vmatprep.subr.bf16.mxu0 0
    %80 = vmatpush1.bf16.msra.mxu0 %v62
    %81 = vmatprep.subr.bf16.mxu0 0
    %82 = vmatpush1.bf16.msra.mxu0 %v61
    %83 = vmatprep.subr.bf16.mxu0 0
    %84 = vmatpush1.bf16.msra.mxu0 %v60
    %85 = vmatprep.subr.bf16.mxu0 0
    %86 = vmatpush1.bf16.msra.mxu0 %v59
    %87 = vmatprep.subr.bf16.mxu0 0
    %88 = vmatpush2.bf16.msra.mxu0 0
    %89 = vmatprep.subr.bf16.mxu0 0
    %90 = vmatpush2.bf16.msra.mxu0 0
    %91 = vmatprep.subr.bf16.mxu0 0
    %92 = vmatpush2.bf16.msra.mxu0 0
    %93 = vmatprep.subr.bf16.mxu0 0
    %94 = vmatpush2.bf16.msra.mxu0 0
    %95 = vmatprep.subr.bf16.mxu0 0
    %96 = vmatpush2.bf16.msra.mxu0 0
    %97 = vmatprep.subr.bf16.mxu0 0
    %98 = vmatpush2.bf16.msra.mxu0 0
    %99 = vmatprep.subr.bf16.mxu0 0
    %100 = vmatpush2.bf16.msra.mxu0 0
    %101 = vmatprep.subr.bf16.mxu0 0
    %102 = vmatpush2.bf16.msra.mxu0 0
    %103 = vmatprep.mubr.bf16.mxu0 0
    %104 = vmatmul.mubr.bf16.gmra.mxu0 %v69
    %v105 = vpop.f32.mrf.mxu0
    %v106 = vadd.f32 %v41, %v105
    %v107 = vpop.f32.mrf.mxu0
    %v108 = vpop.f32.mrf.mxu0
    %v109 = vadd.f32 %v42, %v108
    %v110 = vpop.f32.mrf.mxu0
    %111 = vdwg.mxu0
    %vm112 = vcmask 261120
    %v113 = vsel %vm112, %v106, 0.0
    %114 = vadd.xlane.f32.xlu0 %v113
    %v115 = vpop.xlane.xlu0 %114
    %v116 = vsel %vm112, %v109, 0.0
    %117 = vadd.xlane.f32.xlu0 %v116
    %v118 = vpop.xlane.xlu0 %117
    %v119 = vrcp.pop 32.0
    %v120 = vmul.f32 %v115, %v119
    %v121 = vmul.f32 %v118, %v119
    %v122 = vsub.f32 %v106, %v120
    %v123 = vsub.f32 %v109, %v121
    %v124 = vmul.f32 %v122, %v122
    %v125 = vmul.f32 %v123, %v123
    %v126 = vsel %vm112, %v124, 0.0
    %127 = vadd.xlane.f32.xlu0 %v126
    %v128 = vpop.xlane.xlu0 %127
    %v129 = vsel %vm112, %v125, 0.0
    %130 = vadd.xlane.f32.xlu0 %v129
    %v131 = vpop.xlane.xlu0 %130
    %v132 = vmul.f32 %v128, %v119
    %v133 = vmul.f32 %v131, %v119
    %v134 = vadd.f32 %v132, 1e-12
    %v135 = vadd.f32 %v133, 1e-12
    %v136 = vrsqrt.pop %v134
    %v137 = vrsqrt.pop %v135
    %v138 = vmul.f32 %v122, %v136
    %v139 = vmul.f32 %v123, %v137
    %v140 = vld [vmem:[%s2 + $0x10] sm:$0x1]
    %v141 = vlaneseq
    %v142 = vshrl.u32 %v141, 7
    %v143 = vsub.s32 0, %v142
    %v144 = vrot.slane %v140, %v143
    %v145 = vmul.f32 %v138, %v144
    %v146 = vmul.f32 %v139, %v144
    %v147 = vld [vmem:[%s2 + $0x18] sm:$0x1]
    %v148 = vlaneseq
    %v149 = vshrl.u32 %v148, 7
    %v150 = vsub.s32 0, %v149
    %v151 = vrot.slane %v147, %v150
    %v152 = vadd.f32 %v145, %v151
    %v153 = vadd.f32 %v146, %v151
    %v154 = vlaneseq
    %v155 = vshrl.u32 %v154, 7
    %v156 = vadd.s32 %v155, 8
    %vm157 = vcmp.lt.s32.totalorder %v155, 0
    %v158 = vsub.s32 0, %v155
    %v159 = vsel %vm157, %v158, %v155
    %v160 = vshrl.u32 %v159, 1
    %v161 = vand.u32 %v159, 1
    %v162 = vsub.s32 0, %v161
    %v163 = vsel %vm157, %v162, %v161
    %vm164 = vcmp.lt.s32.totalorder %v156, 0
    %v165 = vsub.s32 0, %v156
    %v166 = vsel %vm164, %v165, %v156
    %v167 = vshrl.u32 %v166, 1
    %v168 = vand.u32 %v166, 1
    %v169 = vsub.s32 0, %v168
    %v170 = vsel %vm164, %v169, %v168
    %vm171 = vcmp.ne.s32.totalorder %v163, 0
    %vm172 = vcmp.ne.s32.totalorder %v170, 0
    %vm173 = vcmp.lt.s32.totalorder %v163, 0
    %vm174 = vcmp.lt.s32.totalorder %v170, 0
    %vm175 = vmand %vm173, %vm171
    %vm176 = vmand %vm174, %vm172
    %v177 = vadd.s32 %v163, 2
    %v178 = vadd.s32 %v170, 2
    %v179 = vsel %vm175, %v177, %v163
    %v180 = vsel %vm176, %v178, %v170
    %vm181 = vcmp.lt.s32.totalorder %v19, 0
    %v182 = vsub.s32 0, %v19
    %v183 = vsel %vm181, %v182, %v19
    %v184 = vshrl.u32 %v183, 1
    %v185 = vand.u32 %v183, 1
    %v186 = vsub.s32 0, %v185
    %v187 = vsel %vm181, %v186, %v185
    %vm188 = vcmp.ne.s32.totalorder %v187, 0
    %vm189 = vcmp.lt.s32.totalorder %v187, 0
    %vm190 = vmand %vm189, %vm188
    %v191 = vadd.s32 %v187, 2
    %v192 = vsel %vm190, %v191, %v187
    %vm193 = vcmp.eq.s32.totalorder %v179, %v192
    %vm194 = vcmp.eq.s32.totalorder %v180, %v192
    %v195 = vsel %vm193, 0.0, -1e+30
    %v196 = vsel %vm194, 0.0, -1e+30
    %v197 = vpack.c.bf16 %v153, %v152
    %v198 = vld [vmem:[%s1 + $0x20] sm:$0xf]
    %v199 = vld [vmem:[%s1 + $0x24] sm:$0xf]
    %v200 = vld [vmem:[%s1 + $0x28] sm:$0xf]
    %v201 = vld [vmem:[%s1 + $0x2c] sm:$0xf]
    %v202 = vld [vmem:[%s2 + $0x20] sm:$0x1]
    %v203 = vlaneseq
    %v204 = vshrl.u32 %v203, 7
    %v205 = vsub.s32 0, %v204
    %v206 = vrot.slane %v202, %v205
    %v211 = vunpack.c.l.b16 %v198
    %v212 = vunpack.c.l.b16 %v199
    %v213 = vunpack.c.l.b16 %v200
    %v214 = vunpack.c.l.b16 %v201
    %v215 = vpack.c.b16 %v212, %v211
    %v216 = vpack.c.b16 %v214, %v213
    %v220 = vsel %vm112, %v197, 0
    %222 = vmatprep.subr.bf16.mxu0 0
    %223 = vmatpush1.bf16.msra.mxu0 0
    %224 = vmatprep.subr.bf16.mxu0 0
    %225 = vmatpush1.bf16.msra.mxu0 0
    %226 = vmatprep.subr.bf16.mxu0 0
    %227 = vmatpush1.bf16.msra.mxu0 0
    %228 = vmatprep.subr.bf16.mxu0 0
    %229 = vmatpush1.bf16.msra.mxu0 0
    %230 = vmatprep.subr.bf16.mxu0 0
    %231 = vmatpush1.bf16.msra.mxu0 0
    %232 = vmatprep.subr.bf16.mxu0 0
    %233 = vmatpush1.bf16.msra.mxu0 0
    %234 = vmatprep.subr.bf16.mxu0 0
    %235 = vmatpush1.bf16.msra.mxu0 %v216
    %236 = vmatprep.subr.bf16.mxu0 0
    %237 = vmatpush1.bf16.msra.mxu0 %v215
    %238 = vmatprep.subr.bf16.mxu0 0
    %239 = vmatpush2.bf16.msra.mxu0 0
    %240 = vmatprep.subr.bf16.mxu0 0
    %241 = vmatpush2.bf16.msra.mxu0 0
    %242 = vmatprep.subr.bf16.mxu0 0
    %243 = vmatpush2.bf16.msra.mxu0 0
    %244 = vmatprep.subr.bf16.mxu0 0
    %245 = vmatpush2.bf16.msra.mxu0 0
    %246 = vmatprep.subr.bf16.mxu0 0
    %247 = vmatpush2.bf16.msra.mxu0 0
    %248 = vmatprep.subr.bf16.mxu0 0
    %249 = vmatpush2.bf16.msra.mxu0 0
    %250 = vmatprep.subr.bf16.mxu0 0
    %251 = vmatpush2.bf16.msra.mxu0 0
    %252 = vmatprep.subr.bf16.mxu0 0
    %253 = vmatpush2.bf16.msra.mxu0 0
    %254 = vmatprep.mubr.bf16.mxu0 0
    %255 = vmatmul.mubr.bf16.gmra.mxu0 %v220
    %v256 = vpop.f32.mrf.mxu0
    %v257 = vadd.f32 %v206, %v256
    %v258 = vpop.f32.mrf.mxu0
    %v259 = vpop.f32.mrf.mxu0
    %v260 = vadd.f32 %v206, %v259
    %v261 = vpop.f32.mrf.mxu0
    %262 = vdwg.mxu0
    %v263 = vld [vmem:[%s1 + $0x30] sm:$0xf]
    %v264 = vld [vmem:[%s1 + $0x34] sm:$0xf]
    %v265 = vld [vmem:[%s1 + $0x38] sm:$0xf]
    %v266 = vld [vmem:[%s1 + $0x3c] sm:$0xf]
    %v267 = vld [vmem:[%s2 + $0x28] sm:$0x1]
    %v268 = vlaneseq
    %v269 = vshrl.u32 %v268, 7
    %v270 = vsub.s32 0, %v269
    %v271 = vrot.slane %v267, %v270
    %v276 = vunpack.c.l.b16 %v263
    %v277 = vunpack.c.l.b16 %v264
    %v278 = vunpack.c.l.b16 %v265
    %v279 = vunpack.c.l.b16 %v266
    %v280 = vpack.c.b16 %v277, %v276
    %v281 = vpack.c.b16 %v279, %v278
    %284 = vmatprep.subr.bf16.mxu0 0
    %285 = vmatpush1.bf16.msra.mxu0 0
    %286 = vmatprep.subr.bf16.mxu0 0
    %287 = vmatpush1.bf16.msra.mxu0 0
    %288 = vmatprep.subr.bf16.mxu0 0
    %289 = vmatpush1.bf16.msra.mxu0 0
    %290 = vmatprep.subr.bf16.mxu0 0
    %291 = vmatpush1.bf16.msra.mxu0 0
    %292 = vmatprep.subr.bf16.mxu0 0
    %293 = vmatpush1.bf16.msra.mxu0 0
    %294 = vmatprep.subr.bf16.mxu0 0
    %295 = vmatpush1.bf16.msra.mxu0 0
    %296 = vmatprep.subr.bf16.mxu0 0
    %297 = vmatpush1.bf16.msra.mxu0 %v281
    %298 = vmatprep.subr.bf16.mxu0 0
    %299 = vmatpush1.bf16.msra.mxu0 %v280
    %300 = vmatprep.subr.bf16.mxu0 0
    %301 = vmatpush2.bf16.msra.mxu0 0
    %302 = vmatprep.subr.bf16.mxu0 0
    %303 = vmatpush2.bf16.msra.mxu0 0
    %304 = vmatprep.subr.bf16.mxu0 0
    %305 = vmatpush2.bf16.msra.mxu0 0
    %306 = vmatprep.subr.bf16.mxu0 0
    %307 = vmatpush2.bf16.msra.mxu0 0
    %308 = vmatprep.subr.bf16.mxu0 0
    %309 = vmatpush2.bf16.msra.mxu0 0
    %310 = vmatprep.subr.bf16.mxu0 0
    %311 = vmatpush2.bf16.msra.mxu0 0
    %312 = vmatprep.subr.bf16.mxu0 0
    %313 = vmatpush2.bf16.msra.mxu0 0
    %314 = vmatprep.subr.bf16.mxu0 0
    %315 = vmatpush2.bf16.msra.mxu0 0
    %316 = vmatprep.mubr.bf16.mxu0 0
    %317 = vmatmul.mubr.bf16.gmra.mxu0 %v220
    %v318 = vpop.f32.mrf.mxu0
    %v319 = vadd.f32 %v271, %v318
    %v320 = vpop.f32.mrf.mxu0
    %v321 = vpop.f32.mrf.mxu0
    %v322 = vadd.f32 %v271, %v321
    %v323 = vpop.f32.mrf.mxu0
    %324 = vdwg.mxu0
    %v325 = vld [vmem:[%s1 + $0x40] sm:$0xf]
    %v326 = vld [vmem:[%s1 + $0x44] sm:$0xf]
    %v327 = vld [vmem:[%s1 + $0x48] sm:$0xf]
    %v328 = vld [vmem:[%s1 + $0x4c] sm:$0xf]
    %v329 = vld [vmem:[%s2 + $0x30] sm:$0x1]
    %v330 = vlaneseq
    %v331 = vshrl.u32 %v330, 7
    %v332 = vsub.s32 0, %v331
    %v333 = vrot.slane %v329, %v332
    %v338 = vunpack.c.l.b16 %v325
    %v339 = vunpack.c.l.b16 %v326
    %v340 = vunpack.c.l.b16 %v327
    %v341 = vunpack.c.l.b16 %v328
    %v342 = vpack.c.b16 %v339, %v338
    %v343 = vpack.c.b16 %v341, %v340
    %346 = vmatprep.subr.bf16.mxu0 0
    %347 = vmatpush1.bf16.msra.mxu0 0
    %348 = vmatprep.subr.bf16.mxu0 0
    %349 = vmatpush1.bf16.msra.mxu0 0
    %350 = vmatprep.subr.bf16.mxu0 0
    %351 = vmatpush1.bf16.msra.mxu0 0
    %352 = vmatprep.subr.bf16.mxu0 0
    %353 = vmatpush1.bf16.msra.mxu0 0
    %354 = vmatprep.subr.bf16.mxu0 0
    %355 = vmatpush1.bf16.msra.mxu0 0
    %356 = vmatprep.subr.bf16.mxu0 0
    %357 = vmatpush1.bf16.msra.mxu0 0
    %358 = vmatprep.subr.bf16.mxu0 0
    %359 = vmatpush1.bf16.msra.mxu0 %v343
    %360 = vmatprep.subr.bf16.mxu0 0
    %361 = vmatpush1.bf16.msra.mxu0 %v342
    %362 = vmatprep.subr.bf16.mxu0 0
    %363 = vmatpush2.bf16.msra.mxu0 0
    %364 = vmatprep.subr.bf16.mxu0 0
    %365 = vmatpush2.bf16.msra.mxu0 0
    %366 = vmatprep.subr.bf16.mxu0 0
    %367 = vmatpush2.bf16.msra.mxu0 0
    %368 = vmatprep.subr.bf16.mxu0 0
    %369 = vmatpush2.bf16.msra.mxu0 0
    %370 = vmatprep.subr.bf16.mxu0 0
    %371 = vmatpush2.bf16.msra.mxu0 0
    %372 = vmatprep.subr.bf16.mxu0 0
    %373 = vmatpush2.bf16.msra.mxu0 0
    %374 = vmatprep.subr.bf16.mxu0 0
    %375 = vmatpush2.bf16.msra.mxu0 0
    %376 = vmatprep.subr.bf16.mxu0 0
    %377 = vmatpush2.bf16.msra.mxu0 0
    %378 = vmatprep.mubr.bf16.mxu0 0
    %379 = vmatmul.mubr.bf16.gmra.mxu0 %v220
    %v380 = vpop.f32.mrf.mxu0
    %v381 = vadd.f32 %v333, %v380
    %v382 = vpop.f32.mrf.mxu0
    %v383 = vpop.f32.mrf.mxu0
    %v384 = vadd.f32 %v333, %v383
    %v385 = vpop.f32.mrf.mxu0
    %386 = vdwg.mxu0
    %v387 = vpack.c.bf16 %v260, %v257
    %v388 = vpack.c.bf16 %v322, %v319
    %v390 = vsel %vm112, %v387, 0
    %v393 = vsel %vm112, %v388, 0
    %395 = vmatprep.subr.bf16.mxu0 0
    %396 = vmatpush1.bf16.xpose.msra.mxu0 0
    %397 = vmatprep.subr.bf16.mxu0 0
    %398 = vmatpush1.bf16.xpose.msra.mxu0 0
    %399 = vmatprep.subr.bf16.mxu0 0
    %400 = vmatpush1.bf16.xpose.msra.mxu0 0
    %401 = vmatprep.subr.bf16.mxu0 0
    %402 = vmatpush1.bf16.xpose.msra.mxu0 0
    %403 = vmatprep.subr.bf16.mxu0 0
    %404 = vmatpush1.bf16.xpose.msra.mxu0 0
    %405 = vmatprep.subr.bf16.mxu0 0
    %406 = vmatpush1.bf16.xpose.msra.mxu0 0
    %407 = vmatprep.subr.bf16.mxu0 0
    %408 = vmatpush1.bf16.xpose.msra.mxu0 0
    %409 = vmatprep.subr.bf16.mxu0 0
    %410 = vmatpush1.bf16.xpose.msra.mxu0 %v393
    %411 = vmatprep.subr.bf16.mxu0 0
    %412 = vmatpush2.bf16.xpose.msra.mxu0 0
    %413 = vmatprep.subr.bf16.mxu0 0
    %414 = vmatpush2.bf16.xpose.msra.mxu0 0
    %415 = vmatprep.subr.bf16.mxu0 0
    %416 = vmatpush2.bf16.xpose.msra.mxu0 0
    %417 = vmatprep.subr.bf16.mxu0 0
    %418 = vmatpush2.bf16.xpose.msra.mxu0 0
    %419 = vmatprep.subr.bf16.mxu0 0
    %420 = vmatpush2.bf16.xpose.msra.mxu0 0
    %421 = vmatprep.subr.bf16.mxu0 0
    %422 = vmatpush2.bf16.xpose.msra.mxu0 0
    %423 = vmatprep.subr.bf16.mxu0 0
    %424 = vmatpush2.bf16.xpose.msra.mxu0 0
    %425 = vmatprep.subr.bf16.mxu0 0
    %426 = vmatpush2.bf16.xpose.msra.mxu0 0
    %427 = vmatprep.mubr.bf16.mxu0 0
    %428 = vmatmul.mubr.bf16.gmra.mxu0 %v390
    %v429 = vpop.f32.mrf.mxu0
    %v430 = vadd.f32 %v195, %v429
    %v431 = vpop.f32.mrf.mxu0
    %v432 = vpop.f32.mrf.mxu0
    %v433 = vadd.f32 %v196, %v432
    %v434 = vpop.f32.mrf.mxu0
    %435 = vdwg.mxu0
    %vm436 = vcmask 130048
    %v437 = vsel %vm436, %v430, -inf
    %438 = vmax.xlane.f32.xlu0 %v437
    %v439 = vpop.xlane.xlu0 %438
    %v440 = vsel %vm436, %v433, -inf
    %441 = vmax.xlane.f32.xlu0 %v440
    %v442 = vpop.xlane.xlu0 %441
    %v443 = vsub.f32 %v430, %v439
    %v444 = vsub.f32 %v433, %v442
    %v445 = vmul.f32 %v443, 1.442695
    %v446 = vpow.pop %v445
    %v447 = vmul.f32 %v444, 1.442695
    %v448 = vpow.pop %v447
    %v449 = vsel %vm436, %v446, 0.0
    %450 = vadd.xlane.f32.xlu0 %v449
    %v451 = vpop.xlane.xlu0 %450
    %v452 = vsel %vm436, %v448, 0.0
    %453 = vadd.xlane.f32.xlu0 %v452
    %v454 = vpop.xlane.xlu0 %453
    %v455 = vrcp.pop %v451
    %v456 = vrcp.pop %v454
    %v457 = vmul.f32 %v446, %v455
    %v458 = vmul.f32 %v448, %v456
    %v459 = vpack.c.bf16 %v458, %v457
    %v460 = vpack.c.bf16 %v384, %v381
    %v461 = vld [vmem:[%s1 + $0x50] sm:$0xf]
    %v462 = vld [vmem:[%s1 + $0x54] sm:$0xf]
    %v463 = vld [vmem:[%s1 + $0x58] sm:$0xf]
    %v464 = vld [vmem:[%s1 + $0x5c] sm:$0xf]
    %v465 = vld [vmem:[%s2 + $0x38] sm:$0x1]
    %v466 = vlaneseq
    %v467 = vshrl.u32 %v466, 7
    %v468 = vsub.s32 0, %v467
    %v469 = vrot.slane %v465, %v468
    %v474 = vunpack.c.l.b16 %v461
    %v475 = vunpack.c.l.b16 %v462
    %v476 = vunpack.c.l.b16 %v463
    %v477 = vunpack.c.l.b16 %v464
    %v478 = vpack.c.b16 %v475, %v474
    %v479 = vpack.c.b16 %v477, %v476
    %482 = vmatprep.subr.bf16.mxu0 0
    %483 = vmatpush1.bf16.msra.mxu0 0
    %484 = vmatprep.subr.bf16.mxu0 0
    %485 = vmatpush1.bf16.msra.mxu0 0
    %486 = vmatprep.subr.bf16.mxu0 0
    %487 = vmatpush1.bf16.msra.mxu0 0
    %488 = vmatprep.subr.bf16.mxu0 0
    %489 = vmatpush1.bf16.msra.mxu0 0
    %490 = vmatprep.subr.bf16.mxu0 0
    %491 = vmatpush1.bf16.msra.mxu0 0
    %492 = vmatprep.subr.bf16.mxu0 0
    %493 = vmatpush1.bf16.msra.mxu0 0
    %494 = vmatprep.subr.bf16.mxu0 0
    %495 = vmatpush1.bf16.msra.mxu0 %v479
    %496 = vmatprep.subr.bf16.mxu0 0
    %497 = vmatpush1.bf16.msra.mxu0 %v478
    %498 = vmatprep.subr.bf16.mxu0 0
    %499 = vmatpush2.bf16.msra.mxu0 0
    %500 = vmatprep.subr.bf16.mxu0 0
    %501 = vmatpush2.bf16.msra.mxu0 0
    %502 = vmatprep.subr.bf16.mxu0 0
    %503 = vmatpush2.bf16.msra.mxu0 0
    %504 = vmatprep.subr.bf16.mxu0 0
    %505 = vmatpush2.bf16.msra.mxu0 0
    %506 = vmatprep.subr.bf16.mxu0 0
    %507 = vmatpush2.bf16.msra.mxu0 0
    %508 = vmatprep.subr.bf16.mxu0 0
    %509 = vmatpush2.bf16.msra.mxu0 0
    %510 = vmatprep.subr.bf16.mxu0 0
    %511 = vmatpush2.bf16.msra.mxu0 0
    %512 = vmatprep.subr.bf16.mxu0 0
    %513 = vmatpush2.bf16.msra.mxu0 0
    %514 = vmatprep.mubr.bf16.mxu0 0
    %515 = vmatmul.mubr.bf16.gmra.mxu0 %v220
    %v516 = vpop.f32.mrf.mxu0
    %v517 = vadd.f32 %v469, %v516
    %v518 = vpop.f32.mrf.mxu0
    %v519 = vpop.f32.mrf.mxu0
    %v520 = vadd.f32 %v469, %v519
    %v521 = vpop.f32.mrf.mxu0
    %522 = vdwg.mxu0
    %v523 = vld [vmem:[%s1 + $0x60] sm:$0xf]
    %v524 = vld [vmem:[%s1 + $0x64] sm:$0xf]
    %v525 = vld [vmem:[%s1 + $0x68] sm:$0xf]
    %v526 = vld [vmem:[%s1 + $0x6c] sm:$0xf]
    %v527 = vld [vmem:[%s2 + $0x40] sm:$0x1]
    %v528 = vlaneseq
    %v529 = vshrl.u32 %v528, 7
    %v530 = vsub.s32 0, %v529
    %v531 = vrot.slane %v527, %v530
    %v536 = vunpack.c.l.b16 %v523
    %v537 = vunpack.c.l.b16 %v524
    %v538 = vunpack.c.l.b16 %v525
    %v539 = vunpack.c.l.b16 %v526
    %v540 = vpack.c.b16 %v537, %v536
    %v541 = vpack.c.b16 %v539, %v538
    %544 = vmatprep.subr.bf16.mxu0 0
    %545 = vmatpush1.bf16.msra.mxu0 0
    %546 = vmatprep.subr.bf16.mxu0 0
    %547 = vmatpush1.bf16.msra.mxu0 0
    %548 = vmatprep.subr.bf16.mxu0 0
    %549 = vmatpush1.bf16.msra.mxu0 0
    %550 = vmatprep.subr.bf16.mxu0 0
    %551 = vmatpush1.bf16.msra.mxu0 0
    %552 = vmatprep.subr.bf16.mxu0 0
    %553 = vmatpush1.bf16.msra.mxu0 0
    %554 = vmatprep.subr.bf16.mxu0 0
    %555 = vmatpush1.bf16.msra.mxu0 0
    %556 = vmatprep.subr.bf16.mxu0 0
    %557 = vmatpush1.bf16.msra.mxu0 %v541
    %558 = vmatprep.subr.bf16.mxu0 0
    %559 = vmatpush1.bf16.msra.mxu0 %v540
    %560 = vmatprep.subr.bf16.mxu0 0
    %561 = vmatpush2.bf16.msra.mxu0 0
    %562 = vmatprep.subr.bf16.mxu0 0
    %563 = vmatpush2.bf16.msra.mxu0 0
    %564 = vmatprep.subr.bf16.mxu0 0
    %565 = vmatpush2.bf16.msra.mxu0 0
    %566 = vmatprep.subr.bf16.mxu0 0
    %567 = vmatpush2.bf16.msra.mxu0 0
    %568 = vmatprep.subr.bf16.mxu0 0
    %569 = vmatpush2.bf16.msra.mxu0 0
    %570 = vmatprep.subr.bf16.mxu0 0
    %571 = vmatpush2.bf16.msra.mxu0 0
    %572 = vmatprep.subr.bf16.mxu0 0
    %573 = vmatpush2.bf16.msra.mxu0 0
    %574 = vmatprep.subr.bf16.mxu0 0
    %575 = vmatpush2.bf16.msra.mxu0 0
    %576 = vmatprep.mubr.bf16.mxu0 0
    %577 = vmatmul.mubr.bf16.gmra.mxu0 %v220
    %v578 = vpop.f32.mrf.mxu0
    %v579 = vadd.f32 %v531, %v578
    %v580 = vpop.f32.mrf.mxu0
    %v581 = vpop.f32.mrf.mxu0
    %v582 = vadd.f32 %v531, %v581
    %v583 = vpop.f32.mrf.mxu0
    %584 = vdwg.mxu0
    %v585 = vld [vmem:[%s1 + $0x70] sm:$0xf]
    %v586 = vld [vmem:[%s1 + $0x74] sm:$0xf]
    %v587 = vld [vmem:[%s1 + $0x78] sm:$0xf]
    %v588 = vld [vmem:[%s1 + $0x7c] sm:$0xf]
    %v589 = vld [vmem:[%s2 + $0x48] sm:$0x1]
    %v590 = vlaneseq
    %v591 = vshrl.u32 %v590, 7
    %v592 = vsub.s32 0, %v591
    %v593 = vrot.slane %v589, %v592
    %v598 = vunpack.c.l.b16 %v585
    %v599 = vunpack.c.l.b16 %v586
    %v600 = vunpack.c.l.b16 %v587
    %v601 = vunpack.c.l.b16 %v588
    %v602 = vpack.c.b16 %v599, %v598
    %v603 = vpack.c.b16 %v601, %v600
    %606 = vmatprep.subr.bf16.mxu0 0
    %607 = vmatpush1.bf16.msra.mxu0 0
    %608 = vmatprep.subr.bf16.mxu0 0
    %609 = vmatpush1.bf16.msra.mxu0 0
    %610 = vmatprep.subr.bf16.mxu0 0
    %611 = vmatpush1.bf16.msra.mxu0 0
    %612 = vmatprep.subr.bf16.mxu0 0
    %613 = vmatpush1.bf16.msra.mxu0 0
    %614 = vmatprep.subr.bf16.mxu0 0
    %615 = vmatpush1.bf16.msra.mxu0 0
    %616 = vmatprep.subr.bf16.mxu0 0
    %617 = vmatpush1.bf16.msra.mxu0 0
    %618 = vmatprep.subr.bf16.mxu0 0
    %619 = vmatpush1.bf16.msra.mxu0 %v603
    %620 = vmatprep.subr.bf16.mxu0 0
    %621 = vmatpush1.bf16.msra.mxu0 %v602
    %622 = vmatprep.subr.bf16.mxu0 0
    %623 = vmatpush2.bf16.msra.mxu0 0
    %624 = vmatprep.subr.bf16.mxu0 0
    %625 = vmatpush2.bf16.msra.mxu0 0
    %626 = vmatprep.subr.bf16.mxu0 0
    %627 = vmatpush2.bf16.msra.mxu0 0
    %628 = vmatprep.subr.bf16.mxu0 0
    %629 = vmatpush2.bf16.msra.mxu0 0
    %630 = vmatprep.subr.bf16.mxu0 0
    %631 = vmatpush2.bf16.msra.mxu0 0
    %632 = vmatprep.subr.bf16.mxu0 0
    %633 = vmatpush2.bf16.msra.mxu0 0
    %634 = vmatprep.subr.bf16.mxu0 0
    %635 = vmatpush2.bf16.msra.mxu0 0
    %636 = vmatprep.subr.bf16.mxu0 0
    %637 = vmatpush2.bf16.msra.mxu0 0
    %638 = vmatprep.mubr.bf16.mxu0 0
    %639 = vmatmul.mubr.bf16.gmra.mxu0 %v220
    %v640 = vpop.f32.mrf.mxu0
    %v641 = vadd.f32 %v593, %v640
    %v642 = vpop.f32.mrf.mxu0
    %v643 = vpop.f32.mrf.mxu0
    %v644 = vadd.f32 %v593, %v643
    %v645 = vpop.f32.mrf.mxu0
    %646 = vdwg.mxu0
    %v647 = vpack.c.bf16 %v520, %v517
    %v648 = vpack.c.bf16 %v582, %v579
    %v650 = vsel %vm112, %v647, 0
    %v653 = vsel %vm112, %v648, 0
    %655 = vmatprep.subr.bf16.mxu0 0
    %656 = vmatpush1.bf16.xpose.msra.mxu0 0
    %657 = vmatprep.subr.bf16.mxu0 0
    %658 = vmatpush1.bf16.xpose.msra.mxu0 0
    %659 = vmatprep.subr.bf16.mxu0 0
    %660 = vmatpush1.bf16.xpose.msra.mxu0 0
    %661 = vmatprep.subr.bf16.mxu0 0
    %662 = vmatpush1.bf16.xpose.msra.mxu0 0
    %663 = vmatprep.subr.bf16.mxu0 0
    %664 = vmatpush1.bf16.xpose.msra.mxu0 0
    %665 = vmatprep.subr.bf16.mxu0 0
    %666 = vmatpush1.bf16.xpose.msra.mxu0 0
    %667 = vmatprep.subr.bf16.mxu0 0
    %668 = vmatpush1.bf16.xpose.msra.mxu0 0
    %669 = vmatprep.subr.bf16.mxu0 0
    %670 = vmatpush1.bf16.xpose.msra.mxu0 %v653
    %671 = vmatprep.subr.bf16.mxu0 0
    %672 = vmatpush2.bf16.xpose.msra.mxu0 0
    %673 = vmatprep.subr.bf16.mxu0 0
    %674 = vmatpush2.bf16.xpose.msra.mxu0 0
    %675 = vmatprep.subr.bf16.mxu0 0
    %676 = vmatpush2.bf16.xpose.msra.mxu0 0
    %677 = vmatprep.subr.bf16.mxu0 0
    %678 = vmatpush2.bf16.xpose.msra.mxu0 0
    %679 = vmatprep.subr.bf16.mxu0 0
    %680 = vmatpush2.bf16.xpose.msra.mxu0 0
    %681 = vmatprep.subr.bf16.mxu0 0
    %682 = vmatpush2.bf16.xpose.msra.mxu0 0
    %683 = vmatprep.subr.bf16.mxu0 0
    %684 = vmatpush2.bf16.xpose.msra.mxu0 0
    %685 = vmatprep.subr.bf16.mxu0 0
    %686 = vmatpush2.bf16.xpose.msra.mxu0 0
    %687 = vmatprep.mubr.bf16.mxu0 0
    %688 = vmatmul.mubr.bf16.gmra.mxu0 %v650
    %v689 = vpop.f32.mrf.mxu0
    %v690 = vadd.f32 %v195, %v689
    %v691 = vpop.f32.mrf.mxu0
    %v692 = vpop.f32.mrf.mxu0
    %v693 = vadd.f32 %v196, %v692
    %v694 = vpop.f32.mrf.mxu0
    %695 = vdwg.mxu0
    %v696 = vsel %vm436, %v690, -inf
    %697 = vmax.xlane.f32.xlu0 %v696
    %v698 = vpop.xlane.xlu0 %697
    %v699 = vsel %vm436, %v693, -inf
    %700 = vmax.xlane.f32.xlu0 %v699
    %v701 = vpop.xlane.xlu0 %700
    %v702 = vsub.f32 %v690, %v698
    %v703 = vsub.f32 %v693, %v701
    %v704 = vmul.f32 %v702, 1.442695
    %v705 = vpow.pop %v704
    %v706 = vmul.f32 %v703, 1.442695
    %v707 = vpow.pop %v706
    %v708 = vsel %vm436, %v705, 0.0
    %709 = vadd.xlane.f32.xlu0 %v708
    %v710 = vpop.xlane.xlu0 %709
    %v711 = vsel %vm436, %v707, 0.0
    %712 = vadd.xlane.f32.xlu0 %v711
    %v713 = vpop.xlane.xlu0 %712
    %v714 = vrcp.pop %v710
    %v715 = vrcp.pop %v713
    %v716 = vmul.f32 %v705, %v714
    %v717 = vmul.f32 %v707, %v715
    %v718 = vpack.c.bf16 %v717, %v716
    %v719 = vpack.c.bf16 %v644, %v641
    %v721 = vsel %vm436, %v718, 0
    %723 = vmatprep.subr.bf16.mxu0 0
    %724 = vmatpush1.bf16.msra.mxu0 0
    %725 = vmatprep.subr.bf16.mxu0 0
    %726 = vmatpush1.bf16.msra.mxu0 0
    %727 = vmatprep.subr.bf16.mxu0 0
    %728 = vmatpush1.bf16.msra.mxu0 0
    %729 = vmatprep.subr.bf16.mxu0 0
    %730 = vmatpush1.bf16.msra.mxu0 0
    %731 = vmatprep.subr.bf16.mxu0 0
    %732 = vmatpush1.bf16.msra.mxu0 0
    %733 = vmatprep.subr.bf16.mxu0 0
    %734 = vmatpush1.bf16.msra.mxu0 0
    %735 = vmatprep.subr.bf16.mxu0 0
    %736 = vmatpush1.bf16.msra.mxu0 0
    %737 = vmatprep.subr.bf16.mxu0 0
    %738 = vmatpush1.bf16.msra.mxu0 %v719
    %739 = vmatprep.subr.bf16.mxu0 0
    %740 = vmatpush2.bf16.msra.mxu0 0
    %741 = vmatprep.subr.bf16.mxu0 0
    %742 = vmatpush2.bf16.msra.mxu0 0
    %743 = vmatprep.subr.bf16.mxu0 0
    %744 = vmatpush2.bf16.msra.mxu0 0
    %745 = vmatprep.subr.bf16.mxu0 0
    %746 = vmatpush2.bf16.msra.mxu0 0
    %747 = vmatprep.subr.bf16.mxu0 0
    %748 = vmatpush2.bf16.msra.mxu0 0
    %749 = vmatprep.subr.bf16.mxu0 0
    %750 = vmatpush2.bf16.msra.mxu0 0
    %751 = vmatprep.subr.bf16.mxu0 0
    %752 = vmatpush2.bf16.msra.mxu0 0
    %753 = vmatprep.subr.bf16.mxu0 0
    %754 = vmatpush2.bf16.msra.mxu0 0
    %755 = vmatprep.mubr.bf16.mxu0 0
    %756 = vmatmul.mubr.bf16.gmra.mxu0 %v721
    %v757 = vpop.f32.mrf.mxu0
    %v758 = vadd.f32 0.0, %v757
    %v759 = vpop.f32.mrf.mxu0
    %v760 = vpop.f32.mrf.mxu0
    %v761 = vadd.f32 0.0, %v760
    %v762 = vpop.f32.mrf.mxu0
    %763 = vdwg.mxu0
    %v765 = vsel %vm436, %v459, 0
    %767 = vmatprep.subr.bf16.mxu0 0
    %768 = vmatpush1.bf16.msra.mxu0 0
    %769 = vmatprep.subr.bf16.mxu0 0
    %770 = vmatpush1.bf16.msra.mxu0 0
    %771 = vmatprep.subr.bf16.mxu0 0
    %772 = vmatpush1.bf16.msra.mxu0 0
    %773 = vmatprep.subr.bf16.mxu0 0
    %774 = vmatpush1.bf16.msra.mxu0 0
    %775 = vmatprep.subr.bf16.mxu0 0
    %776 = vmatpush1.bf16.msra.mxu0 0
    %777 = vmatprep.subr.bf16.mxu0 0
    %778 = vmatpush1.bf16.msra.mxu0 0
    %779 = vmatprep.subr.bf16.mxu0 0
    %780 = vmatpush1.bf16.msra.mxu0 0
    %781 = vmatprep.subr.bf16.mxu0 0
    %782 = vmatpush1.bf16.msra.mxu0 %v460
    %783 = vmatprep.subr.bf16.mxu0 0
    %784 = vmatpush2.bf16.msra.mxu0 0
    %785 = vmatprep.subr.bf16.mxu0 0
    %786 = vmatpush2.bf16.msra.mxu0 0
    %787 = vmatprep.subr.bf16.mxu0 0
    %788 = vmatpush2.bf16.msra.mxu0 0
    %789 = vmatprep.subr.bf16.mxu0 0
    %790 = vmatpush2.bf16.msra.mxu0 0
    %791 = vmatprep.subr.bf16.mxu0 0
    %792 = vmatpush2.bf16.msra.mxu0 0
    %793 = vmatprep.subr.bf16.mxu0 0
    %794 = vmatpush2.bf16.msra.mxu0 0
    %795 = vmatprep.subr.bf16.mxu0 0
    %796 = vmatpush2.bf16.msra.mxu0 0
    %797 = vmatprep.subr.bf16.mxu0 0
    %798 = vmatpush2.bf16.msra.mxu0 0
    %799 = vmatprep.mubr.bf16.mxu0 0
    %800 = vmatmul.mubr.bf16.gmra.mxu0 %v765
    %v801 = vpop.f32.mrf.mxu0
    %v802 = vadd.f32 %v758, %v801
    %v803 = vpop.f32.mrf.mxu0
    %v804 = vpop.f32.mrf.mxu0
    %v805 = vadd.f32 %v761, %v804
    %v806 = vpop.f32.mrf.mxu0
    %807 = vdwg.mxu0
    %v808 = vadd.f32 %v152, %v802
    %v809 = vadd.f32 %v153, %v805
    %v810 = vsel %vm112, %v808, 0.0
    %811 = vadd.xlane.f32.xlu0 %v810
    %v812 = vpop.xlane.xlu0 %811
    %v813 = vsel %vm112, %v809, 0.0
    %814 = vadd.xlane.f32.xlu0 %v813
    %v815 = vpop.xlane.xlu0 %814
    %v816 = vmul.f32 %v812, %v119
    %v817 = vmul.f32 %v815, %v119
    %v818 = vsub.f32 %v808, %v816
    %v819 = vsub.f32 %v809, %v817
    %v820 = vmul.f32 %v818, %v818
    %v821 = vmul.f32 %v819, %v819
    %v822 = vsel %vm112, %v820, 0.0
    %823 = vadd.xlane.f32.xlu0 %v822
    %v824 = vpop.xlane.xlu0 %823
    %v825 = vsel %vm112, %v821, 0.0
    %826 = vadd.xlane.f32.xlu0 %v825
    %v827 = vpop.xlane.xlu0 %826
    %v828 = vmul.f32 %v824, %v119
    %v829 = vmul.f32 %v827, %v119
    %v830 = vadd.f32 %v828, 1e-12
    %v831 = vadd.f32 %v829, 1e-12
    %v832 = vrsqrt.pop %v830
    %v833 = vrsqrt.pop %v831
    %v834 = vmul.f32 %v818, %v832
    %v835 = vmul.f32 %v819, %v833
    %v836 = vld [vmem:[%s2 + $0x50] sm:$0x1]
    %v837 = vlaneseq
    %v838 = vshrl.u32 %v837, 7
    %v839 = vsub.s32 0, %v838
    %v840 = vrot.slane %v836, %v839
    %v841 = vmul.f32 %v834, %v840
    %v842 = vmul.f32 %v835, %v840
    %v843 = vld [vmem:[%s2 + $0x58] sm:$0x1]
    %v844 = vlaneseq
    %v845 = vshrl.u32 %v844, 7
    %v846 = vsub.s32 0, %v845
    %v847 = vrot.slane %v843, %v846
    %v848 = vadd.f32 %v841, %v847
    %v849 = vadd.f32 %v842, %v847
    %v850 = vpack.c.bf16 %v849, %v848
    %v851 = vld [vmem:[%s1 + $0x80] sm:$0xf]
    %v852 = vld [vmem:[%s1 + $0x84] sm:$0xf]
    %v853 = vld [vmem:[%s1 + $0x88] sm:$0xf]
    %v854 = vld [vmem:[%s1 + $0x8c] sm:$0xf]
    %v855 = vld [vmem:[%s2 + $0x60] sm:$0x1]
    %v856 = vlaneseq
    %v857 = vshrl.u32 %v856, 7
    %v858 = vsub.s32 0, %v857
    %v859 = vrot.slane %v855, %v858
    %v864 = vunpack.c.l.b16 %v851
    %v865 = vunpack.c.l.b16 %v852
    %v866 = vunpack.c.l.b16 %v853
    %v867 = vunpack.c.l.b16 %v854
    %v868 = vpack.c.b16 %v865, %v864
    %v869 = vpack.c.b16 %v867, %v866
    %v873 = vsel %vm112, %v850, 0
    %875 = vmatprep.subr.bf16.mxu0 0
    %876 = vmatpush1.bf16.msra.mxu0 0
    %877 = vmatprep.subr.bf16.mxu0 0
    %878 = vmatpush1.bf16.msra.mxu0 0
    %879 = vmatprep.subr.bf16.mxu0 0
    %880 = vmatpush1.bf16.msra.mxu0 0
    %881 = vmatprep.subr.bf16.mxu0 0
    %882 = vmatpush1.bf16.msra.mxu0 0
    %883 = vmatprep.subr.bf16.mxu0 0
    %884 = vmatpush1.bf16.msra.mxu0 0
    %885 = vmatprep.subr.bf16.mxu0 0
    %886 = vmatpush1.bf16.msra.mxu0 0
    %887 = vmatprep.subr.bf16.mxu0 0
    %888 = vmatpush1.bf16.msra.mxu0 %v869
    %889 = vmatprep.subr.bf16.mxu0 0
    %890 = vmatpush1.bf16.msra.mxu0 %v868
    %891 = vmatprep.subr.bf16.mxu0 0
    %892 = vmatpush2.bf16.msra.mxu0 0
    %893 = vmatprep.subr.bf16.mxu0 0
    %894 = vmatpush2.bf16.msra.mxu0 0
    %895 = vmatprep.subr.bf16.mxu0 0
    %896 = vmatpush2.bf16.msra.mxu0 0
    %897 = vmatprep.subr.bf16.mxu0 0
    %898 = vmatpush2.bf16.msra.mxu0 0
    %899 = vmatprep.subr.bf16.mxu0 0
    %900 = vmatpush2.bf16.msra.mxu0 0
    %901 = vmatprep.subr.bf16.mxu0 0
    %902 = vmatpush2.bf16.msra.mxu0 0
    %903 = vmatprep.subr.bf16.mxu0 0
    %904 = vmatpush2.bf16.msra.mxu0 0
    %905 = vmatprep.subr.bf16.mxu0 0
    %906 = vmatpush2.bf16.msra.mxu0 0
    %907 = vmatprep.mubr.bf16.mxu0 0
    %908 = vmatmul.mubr.bf16.gmra.mxu0 %v873
    %v909 = vpop.f32.mrf.mxu0
    %v910 = vadd.f32 %v859, %v909
    %v911 = vpop.f32.mrf.mxu0
    %v912 = vpop.f32.mrf.mxu0
    %v913 = vadd.f32 %v859, %v912
    %v914 = vpop.f32.mrf.mxu0
    %915 = vdwg.mxu0
    %v916 = vmul.f32 %v910, %v910
    %v917 = vmul.f32 %v913, %v913
    %v918 = vmul.f32 %v910, %v916
    %v919 = vmul.f32 %v913, %v917
    %v920 = vmul.f32 %v918, 0.044715
    %v921 = vmul.f32 %v919, 0.044715
    %v922 = vadd.f32 %v910, %v920
    %v923 = vadd.f32 %v913, %v921
    %v924 = vmul.f32 %v922, 0.7978846
    %v925 = vmul.f32 %v923, 0.7978846
    %v926 = vtanh.pop %v924
    %v927 = vtanh.pop %v925
    %v928 = vadd.f32 %v926, 1.0
    %v929 = vadd.f32 %v927, 1.0
    %v930 = vmul.f32 %v928, 0.5
    %v931 = vmul.f32 %v929, 0.5
    %v932 = vmul.f32 %v910, %v930
    %v933 = vmul.f32 %v913, %v931
    %v934 = vpack.c.bf16 %v933, %v932
    %v935 = vld [vmem:[%s1 + $0x90] sm:$0xf]
    %v936 = vld [vmem:[%s1 + $0x94] sm:$0xf]
    %v937 = vld [vmem:[%s1 + $0x98] sm:$0xf]
    %v938 = vld [vmem:[%s1 + $0x9c] sm:$0xf]
    %v939 = vld [vmem:[%s1 + $0xa0] sm:$0xf]
    %v940 = vld [vmem:[%s1 + $0xa4] sm:$0xf]
    %v941 = vld [vmem:[%s1 + $0xa8] sm:$0xf]
    %v942 = vld [vmem:[%s1 + $0xac] sm:$0xf]
    %v943 = vld [vmem:[%s2 + $0x68] sm:$0x1]
    %v944 = vlaneseq
    %v945 = vshrl.u32 %v944, 7
    %v946 = vsub.s32 0, %v945
    %v947 = vrot.slane %v943, %v946
    %v956 = vunpack.c.l.b16 %v935
    %v957 = vunpack.c.l.b16 %v936
    %v958 = vunpack.c.l.b16 %v937
    %v959 = vunpack.c.l.b16 %v938
    %v960 = vunpack.c.l.b16 %v939
    %v961 = vunpack.c.l.b16 %v940
    %v962 = vunpack.c.l.b16 %v941
    %v963 = vunpack.c.l.b16 %v942
    %v964 = vpack.c.b16 %v957, %v956
    %v965 = vpack.c.b16 %v959, %v958
    %v966 = vpack.c.b16 %v961, %v960
    %v967 = vpack.c.b16 %v963, %v962
    %v973 = vsel %vm67, %v934, 0
    %975 = vmatprep.subr.bf16.mxu0 0
    %976 = vmatpush1.bf16.msra.mxu0 0
    %977 = vmatprep.subr.bf16.mxu0 0
    %978 = vmatpush1.bf16.msra.mxu0 0
    %979 = vmatprep.subr.bf16.mxu0 0
    %980 = vmatpush1.bf16.msra.mxu0 0
    %981 = vmatprep.subr.bf16.mxu0 0
    %982 = vmatpush1.bf16.msra.mxu0 0
    %983 = vmatprep.subr.bf16.mxu0 0
    %984 = vmatpush1.bf16.msra.mxu0 %v967
    %985 = vmatprep.subr.bf16.mxu0 0
    %986 = vmatpush1.bf16.msra.mxu0 %v966
    %987 = vmatprep.subr.bf16.mxu0 0
    %988 = vmatpush1.bf16.msra.mxu0 %v965
    %989 = vmatprep.subr.bf16.mxu0 0
    %990 = vmatpush1.bf16.msra.mxu0 %v964
    %991 = vmatprep.subr.bf16.mxu0 0
    %992 = vmatpush2.bf16.msra.mxu0 0
    %993 = vmatprep.subr.bf16.mxu0 0
    %994 = vmatpush2.bf16.msra.mxu0 0
    %995 = vmatprep.subr.bf16.mxu0 0
    %996 = vmatpush2.bf16.msra.mxu0 0
    %997 = vmatprep.subr.bf16.mxu0 0
    %998 = vmatpush2.bf16.msra.mxu0 0
    %999 = vmatprep.subr.bf16.mxu0 0
    %1000 = vmatpush2.bf16.msra.mxu0 0
    %1001 = vmatprep.subr.bf16.mxu0 0
    %1002 = vmatpush2.bf16.msra.mxu0 0
    %1003 = vmatprep.subr.bf16.mxu0 0
    %1004 = vmatpush2.bf16.msra.mxu0 0
    %1005 = vmatprep.subr.bf16.mxu0 0
    %1006 = vmatpush2.bf16.msra.mxu0 0
    %1007 = vmatprep.mubr.bf16.mxu0 0
    %1008 = vmatmul.mubr.bf16.gmra.mxu0 %v973
    %v1009 = vpop.f32.mrf.mxu0
    %v1010 = vadd.f32 %v947, %v1009
    %v1011 = vpop.f32.mrf.mxu0
    %v1012 = vpop.f32.mrf.mxu0
    %v1013 = vadd.f32 %v947, %v1012
    %v1014 = vpop.f32.mrf.mxu0
    %1015 = vdwg.mxu0
    %v1016 = vadd.f32 %v848, %v1010
    %v1017 = vadd.f32 %v849, %v1013
    %v1018 = vsel %vm112, %v1016, 0.0
    %1019 = vadd.xlane.f32.xlu0 %v1018
    %v1020 = vpop.xlane.xlu0 %1019
    %v1021 = vsel %vm112, %v1017, 0.0
    %1022 = vadd.xlane.f32.xlu0 %v1021
    %v1023 = vpop.xlane.xlu0 %1022
    %v1024 = vmul.f32 %v1020, %v119
    %v1025 = vmul.f32 %v1023, %v119
    %v1026 = vsub.f32 %v1016, %v1024
    %v1027 = vsub.f32 %v1017, %v1025
    %v1028 = vmul.f32 %v1026, %v1026
    %v1029 = vmul.f32 %v1027, %v1027
    %v1030 = vsel %vm112, %v1028, 0.0
    %1031 = vadd.xlane.f32.xlu0 %v1030
    %v1032 = vpop.xlane.xlu0 %1031
    %v1033 = vsel %vm112, %v1029, 0.0
    %1034 = vadd.xlane.f32.xlu0 %v1033
    %v1035 = vpop.xlane.xlu0 %1034
    %v1036 = vmul.f32 %v1032, %v119
    %v1037 = vmul.f32 %v1035, %v119
    %v1038 = vadd.f32 %v1036, 1e-12
    %v1039 = vadd.f32 %v1037, 1e-12
    %v1040 = vrsqrt.pop %v1038
    %v1041 = vrsqrt.pop %v1039
    %v1042 = vmul.f32 %v1026, %v1040
    %v1043 = vmul.f32 %v1027, %v1041
    %v1044 = vld [vmem:[%s2 + $0x70] sm:$0x1]
    %v1045 = vlaneseq
    %v1046 = vshrl.u32 %v1045, 7
    %v1047 = vsub.s32 0, %v1046
    %v1048 = vrot.slane %v1044, %v1047
    %v1049 = vmul.f32 %v1042, %v1048
    %v1050 = vmul.f32 %v1043, %v1048
    %v1051 = vld [vmem:[%s2 + $0x78] sm:$0x1]
    %v1052 = vlaneseq
    %v1053 = vshrl.u32 %v1052, 7
    %v1054 = vsub.s32 0, %v1053
    %v1055 = vrot.slane %v1051, %v1054
    %v1056 = vadd.f32 %v1049, %v1055
    %v1057 = vadd.f32 %v1050, %v1055
    %v1058 = vpack.c.bf16 %v1057, %v1056
    %v1059 = vld [vmem:[%s1 + $0xb0] sm:$0xf]
    %v1060 = vld [vmem:[%s1 + $0xb4] sm:$0xf]
    %v1061 = vld [vmem:[%s1 + $0xb8] sm:$0xf]
    %v1062 = vld [vmem:[%s1 + $0xbc] sm:$0xf]
    %v1063 = vld [vmem:[%s2 + $0x80] sm:$0x1]
    %v1064 = vlaneseq
    %v1065 = vshrl.u32 %v1064, 7
    %v1066 = vsub.s32 0, %v1065
    %v1067 = vrot.slane %v1063, %v1066
    %v1072 = vunpack.c.l.b16 %v1059
    %v1073 = vunpack.c.l.b16 %v1060
    %v1074 = vunpack.c.l.b16 %v1061
    %v1075 = vunpack.c.l.b16 %v1062
    %v1076 = vpack.c.b16 %v1073, %v1072
    %v1077 = vpack.c.b16 %v1075, %v1074
    %v1081 = vsel %vm112, %v1058, 0
    %1083 = vmatprep.subr.bf16.mxu0 0
    %1084 = vmatpush1.bf16.msra.mxu0 0
    %1085 = vmatprep.subr.bf16.mxu0 0
    %1086 = vmatpush1.bf16.msra.mxu0 0
    %1087 = vmatprep.subr.bf16.mxu0 0
    %1088 = vmatpush1.bf16.msra.mxu0 0
    %1089 = vmatprep.subr.bf16.mxu0 0
    %1090 = vmatpush1.bf16.msra.mxu0 0
    %1091 = vmatprep.subr.bf16.mxu0 0
    %1092 = vmatpush1.bf16.msra.mxu0 0
    %1093 = vmatprep.subr.bf16.mxu0 0
    %1094 = vmatpush1.bf16.msra.mxu0 0
    %1095 = vmatprep.subr.bf16.mxu0 0
    %1096 = vmatpush1.bf16.msra.mxu0 %v1077
    %1097 = vmatprep.subr.bf16.mxu0 0
    %1098 = vmatpush1.bf16.msra.mxu0 %v1076
    %1099 = vmatprep.subr.bf16.mxu0 0
    %1100 = vmatpush2.bf16.msra.mxu0 0
    %1101 = vmatprep.subr.bf16.mxu0 0
    %1102 = vmatpush2.bf16.msra.mxu0 0
    %1103 = vmatprep.subr.bf16.mxu0 0
    %1104 = vmatpush2.bf16.msra.mxu0 0
    %1105 = vmatprep.subr.bf16.mxu0 0
    %1106 = vmatpush2.bf16.msra.mxu0 0
    %1107 = vmatprep.subr.bf16.mxu0 0
    %1108 = vmatpush2.bf16.msra.mxu0 0
    %1109 = vmatprep.subr.bf16.mxu0 0
    %1110 = vmatpush2.bf16.msra.mxu0 0
    %1111 = vmatprep.subr.bf16.mxu0 0
    %1112 = vmatpush2.bf16.msra.mxu0 0
    %1113 = vmatprep.subr.bf16.mxu0 0
    %1114 = vmatpush2.bf16.msra.mxu0 0
    %1115 = vmatprep.mubr.bf16.mxu0 0
    %1116 = vmatmul.mubr.bf16.gmra.mxu0 %v1081
    %v1117 = vpop.f32.mrf.mxu0
    %v1118 = vadd.f32 %v1067, %v1117
    %v1119 = vpop.f32.mrf.mxu0
    %v1120 = vpop.f32.mrf.mxu0
    %v1121 = vadd.f32 %v1067, %v1120
    %v1122 = vpop.f32.mrf.mxu0
    %1123 = vdwg.mxu0
    %v1124 = vld [vmem:[%s1 + $0xc0] sm:$0xf]
    %v1125 = vld [vmem:[%s1 + $0xc4] sm:$0xf]
    %v1126 = vld [vmem:[%s1 + $0xc8] sm:$0xf]
    %v1127 = vld [vmem:[%s1 + $0xcc] sm:$0xf]
    %v1128 = vld [vmem:[%s2 + $0x88] sm:$0x1]
    %v1129 = vlaneseq
    %v1130 = vshrl.u32 %v1129, 7
    %v1131 = vsub.s32 0, %v1130
    %v1132 = vrot.slane %v1128, %v1131
    %v1137 = vunpack.c.l.b16 %v1124
    %v1138 = vunpack.c.l.b16 %v1125
    %v1139 = vunpack.c.l.b16 %v1126
    %v1140 = vunpack.c.l.b16 %v1127
    %v1141 = vpack.c.b16 %v1138, %v1137
    %v1142 = vpack.c.b16 %v1140, %v1139
    %1145 = vmatprep.subr.bf16.mxu0 0
    %1146 = vmatpush1.bf16.msra.mxu0 0
    %1147 = vmatprep.subr.bf16.mxu0 0
    %1148 = vmatpush1.bf16.msra.mxu0 0
    %1149 = vmatprep.subr.bf16.mxu0 0
    %1150 = vmatpush1.bf16.msra.mxu0 0
    %1151 = vmatprep.subr.bf16.mxu0 0
    %1152 = vmatpush1.bf16.msra.mxu0 0
    %1153 = vmatprep.subr.bf16.mxu0 0
    %1154 = vmatpush1.bf16.msra.mxu0 0
    %1155 = vmatprep.subr.bf16.mxu0 0
    %1156 = vmatpush1.bf16.msra.mxu0 0
    %1157 = vmatprep.subr.bf16.mxu0 0
    %1158 = vmatpush1.bf16.msra.mxu0 %v1142
    %1159 = vmatprep.subr.bf16.mxu0 0
    %1160 = vmatpush1.bf16.msra.mxu0 %v1141
    %1161 = vmatprep.subr.bf16.mxu0 0
    %1162 = vmatpush2.bf16.msra.mxu0 0
    %1163 = vmatprep.subr.bf16.mxu0 0
    %1164 = vmatpush2.bf16.msra.mxu0 0
    %1165 = vmatprep.subr.bf16.mxu0 0
    %1166 = vmatpush2.bf16.msra.mxu0 0
    %1167 = vmatprep.subr.bf16.mxu0 0
    %1168 = vmatpush2.bf16.msra.mxu0 0
    %1169 = vmatprep.subr.bf16.mxu0 0
    %1170 = vmatpush2.bf16.msra.mxu0 0
    %1171 = vmatprep.subr.bf16.mxu0 0
    %1172 = vmatpush2.bf16.msra.mxu0 0
    %1173 = vmatprep.subr.bf16.mxu0 0
    %1174 = vmatpush2.bf16.msra.mxu0 0
    %1175 = vmatprep.subr.bf16.mxu0 0
    %1176 = vmatpush2.bf16.msra.mxu0 0
    %1177 = vmatprep.mubr.bf16.mxu0 0
    %1178 = vmatmul.mubr.bf16.gmra.mxu0 %v1081
    %v1179 = vpop.f32.mrf.mxu0
    %v1180 = vadd.f32 %v1132, %v1179
    %v1181 = vpop.f32.mrf.mxu0
    %v1182 = vpop.f32.mrf.mxu0
    %v1183 = vadd.f32 %v1132, %v1182
    %v1184 = vpop.f32.mrf.mxu0
    %1185 = vdwg.mxu0
    %v1186 = vld [vmem:[%s1 + $0xd0] sm:$0xf]
    %v1187 = vld [vmem:[%s1 + $0xd4] sm:$0xf]
    %v1188 = vld [vmem:[%s1 + $0xd8] sm:$0xf]
    %v1189 = vld [vmem:[%s1 + $0xdc] sm:$0xf]
    %v1190 = vld [vmem:[%s2 + $0x90] sm:$0x1]
    %v1191 = vlaneseq
    %v1192 = vshrl.u32 %v1191, 7
    %v1193 = vsub.s32 0, %v1192
    %v1194 = vrot.slane %v1190, %v1193
    %v1199 = vunpack.c.l.b16 %v1186
    %v1200 = vunpack.c.l.b16 %v1187
    %v1201 = vunpack.c.l.b16 %v1188
    %v1202 = vunpack.c.l.b16 %v1189
    %v1203 = vpack.c.b16 %v1200, %v1199
    %v1204 = vpack.c.b16 %v1202, %v1201
    %1207 = vmatprep.subr.bf16.mxu0 0
    %1208 = vmatpush1.bf16.msra.mxu0 0
    %1209 = vmatprep.subr.bf16.mxu0 0
    %1210 = vmatpush1.bf16.msra.mxu0 0
    %1211 = vmatprep.subr.bf16.mxu0 0
    %1212 = vmatpush1.bf16.msra.mxu0 0
    %1213 = vmatprep.subr.bf16.mxu0 0
    %1214 = vmatpush1.bf16.msra.mxu0 0
    %1215 = vmatprep.subr.bf16.mxu0 0
    %1216 = vmatpush1.bf16.msra.mxu0 0
    %1217 = vmatprep.subr.bf16.mxu0 0
    %1218 = vmatpush1.bf16.msra.mxu0 0
    %1219 = vmatprep.subr.bf16.mxu0 0
    %1220 = vmatpush1.bf16.msra.mxu0 %v1204
    %1221 = vmatprep.subr.bf16.mxu0 0
    %1222 = vmatpush1.bf16.msra.mxu0 %v1203
    %1223 = vmatprep.subr.bf16.mxu0 0
    %1224 = vmatpush2.bf16.msra.mxu0 0
    %1225 = vmatprep.subr.bf16.mxu0 0
    %1226 = vmatpush2.bf16.msra.mxu0 0
    %1227 = vmatprep.subr.bf16.mxu0 0
    %1228 = vmatpush2.bf16.msra.mxu0 0
    %1229 = vmatprep.subr.bf16.mxu0 0
    %1230 = vmatpush2.bf16.msra.mxu0 0
    %1231 = vmatprep.subr.bf16.mxu0 0
    %1232 = vmatpush2.bf16.msra.mxu0 0
    %1233 = vmatprep.subr.bf16.mxu0 0
    %1234 = vmatpush2.bf16.msra.mxu0 0
    %1235 = vmatprep.subr.bf16.mxu0 0
    %1236 = vmatpush2.bf16.msra.mxu0 0
    %1237 = vmatprep.subr.bf16.mxu0 0
    %1238 = vmatpush2.bf16.msra.mxu0 0
    %1239 = vmatprep.mubr.bf16.mxu0 0
    %1240 = vmatmul.mubr.bf16.gmra.mxu0 %v1081
    %v1241 = vpop.f32.mrf.mxu0
    %v1242 = vadd.f32 %v1194, %v1241
    %v1243 = vpop.f32.mrf.mxu0
    %v1244 = vpop.f32.mrf.mxu0
    %v1245 = vadd.f32 %v1194, %v1244
    %v1246 = vpop.f32.mrf.mxu0
    %1247 = vdwg.mxu0
    %v1248 = vpack.c.bf16 %v1121, %v1118
    %v1249 = vpack.c.bf16 %v1183, %v1180
    %v1251 = vsel %vm112, %v1248, 0
    %v1254 = vsel %vm112, %v1249, 0
    %1256 = vmatprep.subr.bf16.mxu0 0
    %1257 = vmatpush1.bf16.xpose.msra.mxu0 0
    %1258 = vmatprep.subr.bf16.mxu0 0
    %1259 = vmatpush1.bf16.xpose.msra.mxu0 0
    %1260 = vmatprep.subr.bf16.mxu0 0
    %1261 = vmatpush1.bf16.xpose.msra.mxu0 0
    %1262 = vmatprep.subr.bf16.mxu0 0
    %1263 = vmatpush1.bf16.xpose.msra.mxu0 0
    %1264 = vmatprep.subr.bf16.mxu0 0
    %1265 = vmatpush1.bf16.xpose.msra.mxu0 0
    %1266 = vmatprep.subr.bf16.mxu0 0
    %1267 = vmatpush1.bf16.xpose.msra.mxu0 0
    %1268 = vmatprep.subr.bf16.mxu0 0
    %1269 = vmatpush1.bf16.xpose.msra.mxu0 0
    %1270 = vmatprep.subr.bf16.mxu0 0
    %1271 = vmatpush1.bf16.xpose.msra.mxu0 %v1254
    %1272 = vmatprep.subr.bf16.mxu0 0
    %1273 = vmatpush2.bf16.xpose.msra.mxu0 0
    %1274 = vmatprep.subr.bf16.mxu0 0
    %1275 = vmatpush2.bf16.xpose.msra.mxu0 0
    %1276 = vmatprep.subr.bf16.mxu0 0
    %1277 = vmatpush2.bf16.xpose.msra.mxu0 0
    %1278 = vmatprep.subr.bf16.mxu0 0
    %1279 = vmatpush2.bf16.xpose.msra.mxu0 0
    %1280 = vmatprep.subr.bf16.mxu0 0
    %1281 = vmatpush2.bf16.xpose.msra.mxu0 0
    %1282 = vmatprep.subr.bf16.mxu0 0
    %1283 = vmatpush2.bf16.xpose.msra.mxu0 0
    %1284 = vmatprep.subr.bf16.mxu0 0
    %1285 = vmatpush2.bf16.xpose.msra.mxu0 0
    %1286 = vmatprep.subr.bf16.mxu0 0
    %1287 = vmatpush2.bf16.xpose.msra.mxu0 0
    %1288 = vmatprep.mubr.bf16.mxu0 0
    %1289 = vmatmul.mubr.bf16.gmra.mxu0 %v1251
    %v1290 = vpop.f32.mrf.mxu0
    %v1291 = vadd.f32 %v195, %v1290
    %v1292 = vpop.f32.mrf.mxu0
    %v1293 = vpop.f32.mrf.mxu0
    %v1294 = vadd.f32 %v196, %v1293
    %v1295 = vpop.f32.mrf.mxu0
    %1296 = vdwg.mxu0
    %v1297 = vsel %vm436, %v1291, -inf
    %1298 = vmax.xlane.f32.xlu0 %v1297
    %v1299 = vpop.xlane.xlu0 %1298
    %v1300 = vsel %vm436, %v1294, -inf
    %1301 = vmax.xlane.f32.xlu0 %v1300
    %v1302 = vpop.xlane.xlu0 %1301
    %v1303 = vsub.f32 %v1291, %v1299
    %v1304 = vsub.f32 %v1294, %v1302
    %v1305 = vmul.f32 %v1303, 1.442695
    %v1306 = vpow.pop %v1305
    %v1307 = vmul.f32 %v1304, 1.442695
    %v1308 = vpow.pop %v1307
    %v1309 = vsel %vm436, %v1306, 0.0
    %1310 = vadd.xlane.f32.xlu0 %v1309
    %v1311 = vpop.xlane.xlu0 %1310
    %v1312 = vsel %vm436, %v1308, 0.0
    %1313 = vadd.xlane.f32.xlu0 %v1312
    %v1314 = vpop.xlane.xlu0 %1313
    %v1315 = vrcp.pop %v1311
    %v1316 = vrcp.pop %v1314
    %v1317 = vmul.f32 %v1306, %v1315
    %v1318 = vmul.f32 %v1308, %v1316
    %v1319 = vpack.c.bf16 %v1318, %v1317
    %v1320 = vpack.c.bf16 %v1245, %v1242
    %v1321 = vld [vmem:[%s1 + $0xe0] sm:$0xf]
    %v1322 = vld [vmem:[%s1 + $0xe4] sm:$0xf]
    %v1323 = vld [vmem:[%s1 + $0xe8] sm:$0xf]
    %v1324 = vld [vmem:[%s1 + $0xec] sm:$0xf]
    %v1325 = vld [vmem:[%s2 + $0x98] sm:$0x1]
    %v1326 = vlaneseq
    %v1327 = vshrl.u32 %v1326, 7
    %v1328 = vsub.s32 0, %v1327
    %v1329 = vrot.slane %v1325, %v1328
    %v1334 = vunpack.c.l.b16 %v1321
    %v1335 = vunpack.c.l.b16 %v1322
    %v1336 = vunpack.c.l.b16 %v1323
    %v1337 = vunpack.c.l.b16 %v1324
    %v1338 = vpack.c.b16 %v1335, %v1334
    %v1339 = vpack.c.b16 %v1337, %v1336
    %1342 = vmatprep.subr.bf16.mxu0 0
    %1343 = vmatpush1.bf16.msra.mxu0 0
    %1344 = vmatprep.subr.bf16.mxu0 0
    %1345 = vmatpush1.bf16.msra.mxu0 0
    %1346 = vmatprep.subr.bf16.mxu0 0
    %1347 = vmatpush1.bf16.msra.mxu0 0
    %1348 = vmatprep.subr.bf16.mxu0 0
    %1349 = vmatpush1.bf16.msra.mxu0 0
    %1350 = vmatprep.subr.bf16.mxu0 0
    %1351 = vmatpush1.bf16.msra.mxu0 0
    %1352 = vmatprep.subr.bf16.mxu0 0
    %1353 = vmatpush1.bf16.msra.mxu0 0
    %1354 = vmatprep.subr.bf16.mxu0 0
    %1355 = vmatpush1.bf16.msra.mxu0 %v1339
    %1356 = vmatprep.subr.bf16.mxu0 0
    %1357 = vmatpush1.bf16.msra.mxu0 %v1338
    %1358 = vmatprep.subr.bf16.mxu0 0
    %1359 = vmatpush2.bf16.msra.mxu0 0
    %1360 = vmatprep.subr.bf16.mxu0 0
    %1361 = vmatpush2.bf16.msra.mxu0 0
    %1362 = vmatprep.subr.bf16.mxu0 0
    %1363 = vmatpush2.bf16.msra.mxu0 0
    %1364 = vmatprep.subr.bf16.mxu0 0
    %1365 = vmatpush2.bf16.msra.mxu0 0
    %1366 = vmatprep.subr.bf16.mxu0 0
    %1367 = vmatpush2.bf16.msra.mxu0 0
    %1368 = vmatprep.subr.bf16.mxu0 0
    %1369 = vmatpush2.bf16.msra.mxu0 0
    %1370 = vmatprep.subr.bf16.mxu0 0
    %1371 = vmatpush2.bf16.msra.mxu0 0
    %1372 = vmatprep.subr.bf16.mxu0 0
    %1373 = vmatpush2.bf16.msra.mxu0 0
    %1374 = vmatprep.mubr.bf16.mxu0 0
    %1375 = vmatmul.mubr.bf16.gmra.mxu0 %v1081
    %v1376 = vpop.f32.mrf.mxu0
    %v1377 = vadd.f32 %v1329, %v1376
    %v1378 = vpop.f32.mrf.mxu0
    %v1379 = vpop.f32.mrf.mxu0
    %v1380 = vadd.f32 %v1329, %v1379
    %v1381 = vpop.f32.mrf.mxu0
    %1382 = vdwg.mxu0
    %v1383 = vld [vmem:[%s1 + $0xf0] sm:$0xf]
    %v1384 = vld [vmem:[%s1 + $0xf4] sm:$0xf]
    %v1385 = vld [vmem:[%s1 + $0xf8] sm:$0xf]
    %v1386 = vld [vmem:[%s1 + $0xfc] sm:$0xf]
    %v1387 = vld [vmem:[%s2 + $0xa0] sm:$0x1]
    %v1388 = vlaneseq
    %v1389 = vshrl.u32 %v1388, 7
    %v1390 = vsub.s32 0, %v1389
    %v1391 = vrot.slane %v1387, %v1390
    %v1396 = vunpack.c.l.b16 %v1383
    %v1397 = vunpack.c.l.b16 %v1384
    %v1398 = vunpack.c.l.b16 %v1385
    %v1399 = vunpack.c.l.b16 %v1386
    %v1400 = vpack.c.b16 %v1397, %v1396
    %v1401 = vpack.c.b16 %v1399, %v1398
    %1404 = vmatprep.subr.bf16.mxu0 0
    %1405 = vmatpush1.bf16.msra.mxu0 0
    %1406 = vmatprep.subr.bf16.mxu0 0
    %1407 = vmatpush1.bf16.msra.mxu0 0
    %1408 = vmatprep.subr.bf16.mxu0 0
    %1409 = vmatpush1.bf16.msra.mxu0 0
    %1410 = vmatprep.subr.bf16.mxu0 0
    %1411 = vmatpush1.bf16.msra.mxu0 0
    %1412 = vmatprep.subr.bf16.mxu0 0
    %1413 = vmatpush1.bf16.msra.mxu0 0
    %1414 = vmatprep.subr.bf16.mxu0 0
    %1415 = vmatpush1.bf16.msra.mxu0 0
    %1416 = vmatprep.subr.bf16.mxu0 0
    %1417 = vmatpush1.bf16.msra.mxu0 %v1401
    %1418 = vmatprep.subr.bf16.mxu0 0
    %1419 = vmatpush1.bf16.msra.mxu0 %v1400
    %1420 = vmatprep.subr.bf16.mxu0 0
    %1421 = vmatpush2.bf16.msra.mxu0 0
    %1422 = vmatprep.subr.bf16.mxu0 0
    %1423 = vmatpush2.bf16.msra.mxu0 0
    %1424 = vmatprep.subr.bf16.mxu0 0
    %1425 = vmatpush2.bf16.msra.mxu0 0
    %1426 = vmatprep.subr.bf16.mxu0 0
    %1427 = vmatpush2.bf16.msra.mxu0 0
    %1428 = vmatprep.subr.bf16.mxu0 0
    %1429 = vmatpush2.bf16.msra.mxu0 0
    %1430 = vmatprep.subr.bf16.mxu0 0
    %1431 = vmatpush2.bf16.msra.mxu0 0
    %1432 = vmatprep.subr.bf16.mxu0 0
    %1433 = vmatpush2.bf16.msra.mxu0 0
    %1434 = vmatprep.subr.bf16.mxu0 0
    %1435 = vmatpush2.bf16.msra.mxu0 0
    %1436 = vmatprep.mubr.bf16.mxu0 0
    %1437 = vmatmul.mubr.bf16.gmra.mxu0 %v1081
    %v1438 = vpop.f32.mrf.mxu0
    %v1439 = vadd.f32 %v1391, %v1438
    %v1440 = vpop.f32.mrf.mxu0
    %v1441 = vpop.f32.mrf.mxu0
    %v1442 = vadd.f32 %v1391, %v1441
    %v1443 = vpop.f32.mrf.mxu0
    %1444 = vdwg.mxu0
    %v1445 = vld [vmem:[%s1 + $0x100] sm:$0xf]
    %v1446 = vld [vmem:[%s1 + $0x104] sm:$0xf]
    %v1447 = vld [vmem:[%s1 + $0x108] sm:$0xf]
    %v1448 = vld [vmem:[%s1 + $0x10c] sm:$0xf]
    %v1449 = vld [vmem:[%s2 + $0xa8] sm:$0x1]
    %v1450 = vlaneseq
    %v1451 = vshrl.u32 %v1450, 7
    %v1452 = vsub.s32 0, %v1451
    %v1453 = vrot.slane %v1449, %v1452
    %v1458 = vunpack.c.l.b16 %v1445
    %v1459 = vunpack.c.l.b16 %v1446
    %v1460 = vunpack.c.l.b16 %v1447
    %v1461 = vunpack.c.l.b16 %v1448
    %v1462 = vpack.c.b16 %v1459, %v1458
    %v1463 = vpack.c.b16 %v1461, %v1460
    %1466 = vmatprep.subr.bf16.mxu0 0
    %1467 = vmatpush1.bf16.msra.mxu0 0
    %1468 = vmatprep.subr.bf16.mxu0 0
    %1469 = vmatpush1.bf16.msra.mxu0 0
    %1470 = vmatprep.subr.bf16.mxu0 0
    %1471 = vmatpush1.bf16.msra.mxu0 0
    %1472 = vmatprep.subr.bf16.mxu0 0
    %1473 = vmatpush1.bf16.msra.mxu0 0
    %1474 = vmatprep.subr.bf16.mxu0 0
    %1475 = vmatpush1.bf16.msra.mxu0 0
    %1476 = vmatprep.subr.bf16.mxu0 0
    %1477 = vmatpush1.bf16.msra.mxu0 0
    %1478 = vmatprep.subr.bf16.mxu0 0
    %1479 = vmatpush1.bf16.msra.mxu0 %v1463
    %1480 = vmatprep.subr.bf16.mxu0 0
    %1481 = vmatpush1.bf16.msra.mxu0 %v1462
    %1482 = vmatprep.subr.bf16.mxu0 0
    %1483 = vmatpush2.bf16.msra.mxu0 0
    %1484 = vmatprep.subr.bf16.mxu0 0
    %1485 = vmatpush2.bf16.msra.mxu0 0
    %1486 = vmatprep.subr.bf16.mxu0 0
    %1487 = vmatpush2.bf16.msra.mxu0 0
    %1488 = vmatprep.subr.bf16.mxu0 0
    %1489 = vmatpush2.bf16.msra.mxu0 0
    %1490 = vmatprep.subr.bf16.mxu0 0
    %1491 = vmatpush2.bf16.msra.mxu0 0
    %1492 = vmatprep.subr.bf16.mxu0 0
    %1493 = vmatpush2.bf16.msra.mxu0 0
    %1494 = vmatprep.subr.bf16.mxu0 0
    %1495 = vmatpush2.bf16.msra.mxu0 0
    %1496 = vmatprep.subr.bf16.mxu0 0
    %1497 = vmatpush2.bf16.msra.mxu0 0
    %1498 = vmatprep.mubr.bf16.mxu0 0
    %1499 = vmatmul.mubr.bf16.gmra.mxu0 %v1081
    %v1500 = vpop.f32.mrf.mxu0
    %v1501 = vadd.f32 %v1453, %v1500
    %v1502 = vpop.f32.mrf.mxu0
    %v1503 = vpop.f32.mrf.mxu0
    %v1504 = vadd.f32 %v1453, %v1503
    %v1505 = vpop.f32.mrf.mxu0
    %1506 = vdwg.mxu0
    %v1507 = vpack.c.bf16 %v1380, %v1377
    %v1508 = vpack.c.bf16 %v1442, %v1439
    %v1510 = vsel %vm112, %v1507, 0
    %v1513 = vsel %vm112, %v1508, 0
    %1515 = vmatprep.subr.bf16.mxu0 0
    %1516 = vmatpush1.bf16.xpose.msra.mxu0 0
    %1517 = vmatprep.subr.bf16.mxu0 0
    %1518 = vmatpush1.bf16.xpose.msra.mxu0 0
    %1519 = vmatprep.subr.bf16.mxu0 0
    %1520 = vmatpush1.bf16.xpose.msra.mxu0 0
    %1521 = vmatprep.subr.bf16.mxu0 0
    %1522 = vmatpush1.bf16.xpose.msra.mxu0 0
    %1523 = vmatprep.subr.bf16.mxu0 0
    %1524 = vmatpush1.bf16.xpose.msra.mxu0 0
    %1525 = vmatprep.subr.bf16.mxu0 0
    %1526 = vmatpush1.bf16.xpose.msra.mxu0 0
    %1527 = vmatprep.subr.bf16.mxu0 0
    %1528 = vmatpush1.bf16.xpose.msra.mxu0 0
    %1529 = vmatprep.subr.bf16.mxu0 0
    %1530 = vmatpush1.bf16.xpose.msra.mxu0 %v1513
    %1531 = vmatprep.subr.bf16.mxu0 0
    %1532 = vmatpush2.bf16.xpose.msra.mxu0 0
    %1533 = vmatprep.subr.bf16.mxu0 0
    %1534 = vmatpush2.bf16.xpose.msra.mxu0 0
    %1535 = vmatprep.subr.bf16.mxu0 0
    %1536 = vmatpush2.bf16.xpose.msra.mxu0 0
    %1537 = vmatprep.subr.bf16.mxu0 0
    %1538 = vmatpush2.bf16.xpose.msra.mxu0 0
    %1539 = vmatprep.subr.bf16.mxu0 0
    %1540 = vmatpush2.bf16.xpose.msra.mxu0 0
    %1541 = vmatprep.subr.bf16.mxu0 0
    %1542 = vmatpush2.bf16.xpose.msra.mxu0 0
    %1543 = vmatprep.subr.bf16.mxu0 0
    %1544 = vmatpush2.bf16.xpose.msra.mxu0 0
    %1545 = vmatprep.subr.bf16.mxu0 0
    %1546 = vmatpush2.bf16.xpose.msra.mxu0 0
    %1547 = vmatprep.mubr.bf16.mxu0 0
    %1548 = vmatmul.mubr.bf16.gmra.mxu0 %v1510
    %v1549 = vpop.f32.mrf.mxu0
    %v1550 = vadd.f32 %v195, %v1549
    %v1551 = vpop.f32.mrf.mxu0
    %v1552 = vpop.f32.mrf.mxu0
    %v1553 = vadd.f32 %v196, %v1552
    %v1554 = vpop.f32.mrf.mxu0
    %1555 = vdwg.mxu0
    %v1556 = vsel %vm436, %v1550, -inf
    %1557 = vmax.xlane.f32.xlu0 %v1556
    %v1558 = vpop.xlane.xlu0 %1557
    %v1559 = vsel %vm436, %v1553, -inf
    %1560 = vmax.xlane.f32.xlu0 %v1559
    %v1561 = vpop.xlane.xlu0 %1560
    %v1562 = vsub.f32 %v1550, %v1558
    %v1563 = vsub.f32 %v1553, %v1561
    %v1564 = vmul.f32 %v1562, 1.442695
    %v1565 = vpow.pop %v1564
    %v1566 = vmul.f32 %v1563, 1.442695
    %v1567 = vpow.pop %v1566
    %v1568 = vsel %vm436, %v1565, 0.0
    %1569 = vadd.xlane.f32.xlu0 %v1568
    %v1570 = vpop.xlane.xlu0 %1569
    %v1571 = vsel %vm436, %v1567, 0.0
    %1572 = vadd.xlane.f32.xlu0 %v1571
    %v1573 = vpop.xlane.xlu0 %1572
    %v1574 = vrcp.pop %v1570
    %v1575 = vrcp.pop %v1573
    %v1576 = vmul.f32 %v1565, %v1574
    %v1577 = vmul.f32 %v1567, %v1575
    %v1578 = vpack.c.bf16 %v1577, %v1576
    %v1579 = vpack.c.bf16 %v1504, %v1501
    %v1581 = vsel %vm436, %v1578, 0
    %1583 = vmatprep.subr.bf16.mxu0 0
    %1584 = vmatpush1.bf16.msra.mxu0 0
    %1585 = vmatprep.subr.bf16.mxu0 0
    %1586 = vmatpush1.bf16.msra.mxu0 0
    %1587 = vmatprep.subr.bf16.mxu0 0
    %1588 = vmatpush1.bf16.msra.mxu0 0
    %1589 = vmatprep.subr.bf16.mxu0 0
    %1590 = vmatpush1.bf16.msra.mxu0 0
    %1591 = vmatprep.subr.bf16.mxu0 0
    %1592 = vmatpush1.bf16.msra.mxu0 0
    %1593 = vmatprep.subr.bf16.mxu0 0
    %1594 = vmatpush1.bf16.msra.mxu0 0
    %1595 = vmatprep.subr.bf16.mxu0 0
    %1596 = vmatpush1.bf16.msra.mxu0 0
    %1597 = vmatprep.subr.bf16.mxu0 0
    %1598 = vmatpush1.bf16.msra.mxu0 %v1579
    %1599 = vmatprep.subr.bf16.mxu0 0
    %1600 = vmatpush2.bf16.msra.mxu0 0
    %1601 = vmatprep.subr.bf16.mxu0 0
    %1602 = vmatpush2.bf16.msra.mxu0 0
    %1603 = vmatprep.subr.bf16.mxu0 0
    %1604 = vmatpush2.bf16.msra.mxu0 0
    %1605 = vmatprep.subr.bf16.mxu0 0
    %1606 = vmatpush2.bf16.msra.mxu0 0
    %1607 = vmatprep.subr.bf16.mxu0 0
    %1608 = vmatpush2.bf16.msra.mxu0 0
    %1609 = vmatprep.subr.bf16.mxu0 0
    %1610 = vmatpush2.bf16.msra.mxu0 0
    %1611 = vmatprep.subr.bf16.mxu0 0
    %1612 = vmatpush2.bf16.msra.mxu0 0
    %1613 = vmatprep.subr.bf16.mxu0 0
    %1614 = vmatpush2.bf16.msra.mxu0 0
    %1615 = vmatprep.mubr.bf16.mxu0 0
    %1616 = vmatmul.mubr.bf16.gmra.mxu0 %v1581
    %v1617 = vpop.f32.mrf.mxu0
    %v1618 = vadd.f32 0.0, %v1617
    %v1619 = vpop.f32.mrf.mxu0
    %v1620 = vpop.f32.mrf.mxu0
    %v1621 = vadd.f32 0.0, %v1620
    %v1622 = vpop.f32.mrf.mxu0
    %1623 = vdwg.mxu0
    %v1625 = vsel %vm436, %v1319, 0
    %1627 = vmatprep.subr.bf16.mxu0 0
    %1628 = vmatpush1.bf16.msra.mxu0 0
    %1629 = vmatprep.subr.bf16.mxu0 0
    %1630 = vmatpush1.bf16.msra.mxu0 0
    %1631 = vmatprep.subr.bf16.mxu0 0
    %1632 = vmatpush1.bf16.msra.mxu0 0
    %1633 = vmatprep.subr.bf16.mxu0 0
    %1634 = vmatpush1.bf16.msra.mxu0 0
    %1635 = vmatprep.subr.bf16.mxu0 0
    %1636 = vmatpush1.bf16.msra.mxu0 0
    %1637 = vmatprep.subr.bf16.mxu0 0
    %1638 = vmatpush1.bf16.msra.mxu0 0
    %1639 = vmatprep.subr.bf16.mxu0 0
    %1640 = vmatpush1.bf16.msra.mxu0 0
    %1641 = vmatprep.subr.bf16.mxu0 0
    %1642 = vmatpush1.bf16.msra.mxu0 %v1320
    %1643 = vmatprep.subr.bf16.mxu0 0
    %1644 = vmatpush2.bf16.msra.mxu0 0
    %1645 = vmatprep.subr.bf16.mxu0 0
    %1646 = vmatpush2.bf16.msra.mxu0 0
    %1647 = vmatprep.subr.bf16.mxu0 0
    %1648 = vmatpush2.bf16.msra.mxu0 0
    %1649 = vmatprep.subr.bf16.mxu0 0
    %1650 = vmatpush2.bf16.msra.mxu0 0
    %1651 = vmatprep.subr.bf16.mxu0 0
    %1652 = vmatpush2.bf16.msra.mxu0 0
    %1653 = vmatprep.subr.bf16.mxu0 0
    %1654 = vmatpush2.bf16.msra.mxu0 0
    %1655 = vmatprep.subr.bf16.mxu0 0
    %1656 = vmatpush2.bf16.msra.mxu0 0
    %1657 = vmatprep.subr.bf16.mxu0 0
    %1658 = vmatpush2.bf16.msra.mxu0 0
    %1659 = vmatprep.mubr.bf16.mxu0 0
    %1660 = vmatmul.mubr.bf16.gmra.mxu0 %v1625
    %v1661 = vpop.f32.mrf.mxu0
    %v1662 = vadd.f32 %v1618, %v1661
    %v1663 = vpop.f32.mrf.mxu0
    %v1664 = vpop.f32.mrf.mxu0
    %v1665 = vadd.f32 %v1621, %v1664
    %v1666 = vpop.f32.mrf.mxu0
    %1667 = vdwg.mxu0
    %v1668 = vadd.f32 %v1056, %v1662
    %v1669 = vadd.f32 %v1057, %v1665
    %v1670 = vsel %vm112, %v1668, 0.0
    %1671 = vadd.xlane.f32.xlu0 %v1670
    %v1672 = vpop.xlane.xlu0 %1671
    %v1673 = vsel %vm112, %v1669, 0.0
    %1674 = vadd.xlane.f32.xlu0 %v1673
    %v1675 = vpop.xlane.xlu0 %1674
    %v1676 = vmul.f32 %v1672, %v119
    %v1677 = vmul.f32 %v1675, %v119
    %v1678 = vsub.f32 %v1668, %v1676
    %v1679 = vsub.f32 %v1669, %v1677
    %v1680 = vmul.f32 %v1678, %v1678
    %v1681 = vmul.f32 %v1679, %v1679
    %v1682 = vsel %vm112, %v1680, 0.0
    %1683 = vadd.xlane.f32.xlu0 %v1682
    %v1684 = vpop.xlane.xlu0 %1683
    %v1685 = vsel %vm112, %v1681, 0.0
    %1686 = vadd.xlane.f32.xlu0 %v1685
    %v1687 = vpop.xlane.xlu0 %1686
    %v1688 = vmul.f32 %v1684, %v119
    %v1689 = vmul.f32 %v1687, %v119
    %v1690 = vadd.f32 %v1688, 1e-12
    %v1691 = vadd.f32 %v1689, 1e-12
    %v1692 = vrsqrt.pop %v1690
    %v1693 = vrsqrt.pop %v1691
    %v1694 = vmul.f32 %v1678, %v1692
    %v1695 = vmul.f32 %v1679, %v1693
    %v1696 = vld [vmem:[%s2 + $0xb0] sm:$0x1]
    %v1697 = vlaneseq
    %v1698 = vshrl.u32 %v1697, 7
    %v1699 = vsub.s32 0, %v1698
    %v1700 = vrot.slane %v1696, %v1699
    %v1701 = vmul.f32 %v1694, %v1700
    %v1702 = vmul.f32 %v1695, %v1700
    %v1703 = vld [vmem:[%s2 + $0xb8] sm:$0x1]
    %v1704 = vlaneseq
    %v1705 = vshrl.u32 %v1704, 7
    %v1706 = vsub.s32 0, %v1705
    %v1707 = vrot.slane %v1703, %v1706
    %v1708 = vadd.f32 %v1701, %v1707
    %v1709 = vadd.f32 %v1702, %v1707
    %v1710 = vpack.c.bf16 %v1709, %v1708
    %v1711 = vld [vmem:[%s1 + $0x110] sm:$0xf]
    %v1712 = vld [vmem:[%s1 + $0x114] sm:$0xf]
    %v1713 = vld [vmem:[%s1 + $0x118] sm:$0xf]
    %v1714 = vld [vmem:[%s1 + $0x11c] sm:$0xf]
    %v1715 = vld [vmem:[%s2 + $0xc0] sm:$0x1]
    %v1716 = vlaneseq
    %v1717 = vshrl.u32 %v1716, 7
    %v1718 = vsub.s32 0, %v1717
    %v1719 = vrot.slane %v1715, %v1718
    %v1724 = vunpack.c.l.b16 %v1711
    %v1725 = vunpack.c.l.b16 %v1712
    %v1726 = vunpack.c.l.b16 %v1713
    %v1727 = vunpack.c.l.b16 %v1714
    %v1728 = vpack.c.b16 %v1725, %v1724
    %v1729 = vpack.c.b16 %v1727, %v1726
    %v1733 = vsel %vm112, %v1710, 0
    %1735 = vmatprep.subr.bf16.mxu0 0
    %1736 = vmatpush1.bf16.msra.mxu0 0
    %1737 = vmatprep.subr.bf16.mxu0 0
    %1738 = vmatpush1.bf16.msra.mxu0 0
    %1739 = vmatprep.subr.bf16.mxu0 0
    %1740 = vmatpush1.bf16.msra.mxu0 0
    %1741 = vmatprep.subr.bf16.mxu0 0
    %1742 = vmatpush1.bf16.msra.mxu0 0
    %1743 = vmatprep.subr.bf16.mxu0 0
    %1744 = vmatpush1.bf16.msra.mxu0 0
    %1745 = vmatprep.subr.bf16.mxu0 0
    %1746 = vmatpush1.bf16.msra.mxu0 0
    %1747 = vmatprep.subr.bf16.mxu0 0
    %1748 = vmatpush1.bf16.msra.mxu0 %v1729
    %1749 = vmatprep.subr.bf16.mxu0 0
    %1750 = vmatpush1.bf16.msra.mxu0 %v1728
    %1751 = vmatprep.subr.bf16.mxu0 0
    %1752 = vmatpush2.bf16.msra.mxu0 0
    %1753 = vmatprep.subr.bf16.mxu0 0
    %1754 = vmatpush2.bf16.msra.mxu0 0
    %1755 = vmatprep.subr.bf16.mxu0 0
    %1756 = vmatpush2.bf16.msra.mxu0 0
    %1757 = vmatprep.subr.bf16.mxu0 0
    %1758 = vmatpush2.bf16.msra.mxu0 0
    %1759 = vmatprep.subr.bf16.mxu0 0
    %1760 = vmatpush2.bf16.msra.mxu0 0
    %1761 = vmatprep.subr.bf16.mxu0 0
    %1762 = vmatpush2.bf16.msra.mxu0 0
    %1763 = vmatprep.subr.bf16.mxu0 0
    %1764 = vmatpush2.bf16.msra.mxu0 0
    %1765 = vmatprep.subr.bf16.mxu0 0
    %1766 = vmatpush2.bf16.msra.mxu0 0
    %1767 = vmatprep.mubr.bf16.mxu0 0
    %1768 = vmatmul.mubr.bf16.gmra.mxu0 %v1733
    %v1769 = vpop.f32.mrf.mxu0
    %v1770 = vadd.f32 %v1719, %v1769
    %v1771 = vpop.f32.mrf.mxu0
    %v1772 = vpop.f32.mrf.mxu0
    %v1773 = vadd.f32 %v1719, %v1772
    %v1774 = vpop.f32.mrf.mxu0
    %1775 = vdwg.mxu0
    %v1776 = vmul.f32 %v1770, %v1770
    %v1777 = vmul.f32 %v1773, %v1773
    %v1778 = vmul.f32 %v1770, %v1776
    %v1779 = vmul.f32 %v1773, %v1777
    %v1780 = vmul.f32 %v1778, 0.044715
    %v1781 = vmul.f32 %v1779, 0.044715
    %v1782 = vadd.f32 %v1770, %v1780
    %v1783 = vadd.f32 %v1773, %v1781
    %v1784 = vmul.f32 %v1782, 0.7978846
    %v1785 = vmul.f32 %v1783, 0.7978846
    %v1786 = vtanh.pop %v1784
    %v1787 = vtanh.pop %v1785
    %v1788 = vadd.f32 %v1786, 1.0
    %v1789 = vadd.f32 %v1787, 1.0
    %v1790 = vmul.f32 %v1788, 0.5
    %v1791 = vmul.f32 %v1789, 0.5
    %v1792 = vmul.f32 %v1770, %v1790
    %v1793 = vmul.f32 %v1773, %v1791
    %v1794 = vpack.c.bf16 %v1793, %v1792
    %v1795 = vld [vmem:[%s1 + $0x120] sm:$0xf]
    %v1796 = vld [vmem:[%s1 + $0x124] sm:$0xf]
    %v1797 = vld [vmem:[%s1 + $0x128] sm:$0xf]
    %v1798 = vld [vmem:[%s1 + $0x12c] sm:$0xf]
    %v1799 = vld [vmem:[%s1 + $0x130] sm:$0xf]
    %v1800 = vld [vmem:[%s1 + $0x134] sm:$0xf]
    %v1801 = vld [vmem:[%s1 + $0x138] sm:$0xf]
    %v1802 = vld [vmem:[%s1 + $0x13c] sm:$0xf]
    %v1803 = vld [vmem:[%s2 + $0xc8] sm:$0x1]
    %v1804 = vlaneseq
    %v1805 = vshrl.u32 %v1804, 7
    %v1806 = vsub.s32 0, %v1805
    %v1807 = vrot.slane %v1803, %v1806
    %v1816 = vunpack.c.l.b16 %v1795
    %v1817 = vunpack.c.l.b16 %v1796
    %v1818 = vunpack.c.l.b16 %v1797
    %v1819 = vunpack.c.l.b16 %v1798
    %v1820 = vunpack.c.l.b16 %v1799
    %v1821 = vunpack.c.l.b16 %v1800
    %v1822 = vunpack.c.l.b16 %v1801
    %v1823 = vunpack.c.l.b16 %v1802
    %v1824 = vpack.c.b16 %v1817, %v1816
    %v1825 = vpack.c.b16 %v1819, %v1818
    %v1826 = vpack.c.b16 %v1821, %v1820
    %v1827 = vpack.c.b16 %v1823, %v1822
    %v1833 = vsel %vm67, %v1794, 0
    %1835 = vmatprep.subr.bf16.mxu0 0
    %1836 = vmatpush1.bf16.msra.mxu0 0
    %1837 = vmatprep.subr.bf16.mxu0 0
    %1838 = vmatpush1.bf16.msra.mxu0 0
    %1839 = vmatprep.subr.bf16.mxu0 0
    %1840 = vmatpush1.bf16.msra.mxu0 0
    %1841 = vmatprep.subr.bf16.mxu0 0
    %1842 = vmatpush1.bf16.msra.mxu0 0
    %1843 = vmatprep.subr.bf16.mxu0 0
    %1844 = vmatpush1.bf16.msra.mxu0 %v1827
    %1845 = vmatprep.subr.bf16.mxu0 0
    %1846 = vmatpush1.bf16.msra.mxu0 %v1826
    %1847 = vmatprep.subr.bf16.mxu0 0
    %1848 = vmatpush1.bf16.msra.mxu0 %v1825
    %1849 = vmatprep.subr.bf16.mxu0 0
    %1850 = vmatpush1.bf16.msra.mxu0 %v1824
    %1851 = vmatprep.subr.bf16.mxu0 0
    %1852 = vmatpush2.bf16.msra.mxu0 0
    %1853 = vmatprep.subr.bf16.mxu0 0
    %1854 = vmatpush2.bf16.msra.mxu0 0
    %1855 = vmatprep.subr.bf16.mxu0 0
    %1856 = vmatpush2.bf16.msra.mxu0 0
    %1857 = vmatprep.subr.bf16.mxu0 0
    %1858 = vmatpush2.bf16.msra.mxu0 0
    %1859 = vmatprep.subr.bf16.mxu0 0
    %1860 = vmatpush2.bf16.msra.mxu0 0
    %1861 = vmatprep.subr.bf16.mxu0 0
    %1862 = vmatpush2.bf16.msra.mxu0 0
    %1863 = vmatprep.subr.bf16.mxu0 0
    %1864 = vmatpush2.bf16.msra.mxu0 0
    %1865 = vmatprep.subr.bf16.mxu0 0
    %1866 = vmatpush2.bf16.msra.mxu0 0
    %1867 = vmatprep.mubr.bf16.mxu0 0
    %1868 = vmatmul.mubr.bf16.gmra.mxu0 %v1833
    %v1869 = vpop.f32.mrf.mxu0
    %v1870 = vadd.f32 %v1807, %v1869
    %v1871 = vpop.f32.mrf.mxu0
    %v1872 = vpop.f32.mrf.mxu0
    %v1873 = vadd.f32 %v1807, %v1872
    %v1874 = vpop.f32.mrf.mxu0
    %1875 = vdwg.mxu0
    %v1876 = vadd.f32 %v1708, %v1870
    %v1877 = vadd.f32 %v1709, %v1873
    %v1878 = vsel %vm112, %v1876, 0.0
    %1879 = vadd.xlane.f32.xlu0 %v1878
    %v1880 = vpop.xlane.xlu0 %1879
    %v1881 = vsel %vm112, %v1877, 0.0
    %1882 = vadd.xlane.f32.xlu0 %v1881
    %v1883 = vpop.xlane.xlu0 %1882
    %v1884 = vmul.f32 %v1880, %v119
    %v1885 = vmul.f32 %v1883, %v119
    %v1886 = vsub.f32 %v1876, %v1884
    %v1887 = vsub.f32 %v1877, %v1885
    %v1888 = vmul.f32 %v1886, %v1886
    %v1889 = vmul.f32 %v1887, %v1887
    %v1890 = vsel %vm112, %v1888, 0.0
    %1891 = vadd.xlane.f32.xlu0 %v1890
    %v1892 = vpop.xlane.xlu0 %1891
    %v1893 = vsel %vm112, %v1889, 0.0
    %1894 = vadd.xlane.f32.xlu0 %v1893
    %v1895 = vpop.xlane.xlu0 %1894
    %v1896 = vmul.f32 %v1892, %v119
    %v1897 = vmul.f32 %v1895, %v119
    %v1898 = vadd.f32 %v1896, 1e-12
    %v1899 = vadd.f32 %v1897, 1e-12
    %v1900 = vrsqrt.pop %v1898
    %v1901 = vrsqrt.pop %v1899
    %v1902 = vmul.f32 %v1886, %v1900
    %v1903 = vmul.f32 %v1887, %v1901
    %v1904 = vld [vmem:[%s2 + $0xd0] sm:$0x1]
    %v1905 = vlaneseq
    %v1906 = vshrl.u32 %v1905, 7
    %v1907 = vsub.s32 0, %v1906
    %v1908 = vrot.slane %v1904, %v1907
    %v1909 = vmul.f32 %v1902, %v1908
    %v1910 = vmul.f32 %v1903, %v1908
    %v1911 = vld [vmem:[%s2 + $0xd8] sm:$0x1]
    %v1912 = vlaneseq
    %v1913 = vshrl.u32 %v1912, 7
    %v1914 = vsub.s32 0, %v1913
    %v1915 = vrot.slane %v1911, %v1914
    %v1916 = vadd.f32 %v1909, %v1915
    %v1917 = vadd.f32 %v1910, %v1915
    %v1918 = vpack.c.bf16 %v1917, %v1916
    %v1919 = vld [vmem:[%s1 + $0x140] sm:$0xf]
    %v1920 = vld [vmem:[%s1 + $0x144] sm:$0xf]
    %v1921 = vld [vmem:[%s1 + $0x148] sm:$0xf]
    %v1922 = vld [vmem:[%s1 + $0x14c] sm:$0xf]
    %v1927 = vunpack.c.l.b16 %v1919
    %v1928 = vunpack.c.l.b16 %v1920
    %v1929 = vunpack.c.l.b16 %v1921
    %v1930 = vunpack.c.l.b16 %v1922
    %v1931 = vpack.c.b16 %v1928, %v1927
    %v1932 = vpack.c.b16 %v1930, %v1929
    %v1936 = vsel %vm112, %v1918, 0
    %1938 = vmatprep.subr.bf16.mxu0 0
    %1939 = vmatpush1.bf16.msra.mxu0 0
    %1940 = vmatprep.subr.bf16.mxu0 0
    %1941 = vmatpush1.bf16.msra.mxu0 0
    %1942 = vmatprep.subr.bf16.mxu0 0
    %1943 = vmatpush1.bf16.msra.mxu0 0
    %1944 = vmatprep.subr.bf16.mxu0 0
    %1945 = vmatpush1.bf16.msra.mxu0 0
    %1946 = vmatprep.subr.bf16.mxu0 0
    %1947 = vmatpush1.bf16.msra.mxu0 0
    %1948 = vmatprep.subr.bf16.mxu0 0
    %1949 = vmatpush1.bf16.msra.mxu0 0
    %1950 = vmatprep.subr.bf16.mxu0 0
    %1951 = vmatpush1.bf16.msra.mxu0 %v1932
    %1952 = vmatprep.subr.bf16.mxu0 0
    %1953 = vmatpush1.bf16.msra.mxu0 %v1931
    %1954 = vmatprep.subr.bf16.mxu0 0
    %1955 = vmatpush2.bf16.msra.mxu0 0
    %1956 = vmatprep.subr.bf16.mxu0 0
    %1957 = vmatpush2.bf16.msra.mxu0 0
    %1958 = vmatprep.subr.bf16.mxu0 0
    %1959 = vmatpush2.bf16.msra.mxu0 0
    %1960 = vmatprep.subr.bf16.mxu0 0
    %1961 = vmatpush2.bf16.msra.mxu0 0
    %1962 = vmatprep.subr.bf16.mxu0 0
    %1963 = vmatpush2.bf16.msra.mxu0 0
    %1964 = vmatprep.subr.bf16.mxu0 0
    %1965 = vmatpush2.bf16.msra.mxu0 0
    %1966 = vmatprep.subr.bf16.mxu0 0
    %1967 = vmatpush2.bf16.msra.mxu0 0
    %1968 = vmatprep.subr.bf16.mxu0 0
    %1969 = vmatpush2.bf16.msra.mxu0 0
    %1970 = vmatprep.mubr.bf16.mxu0 0
    %1971 = vmatmul.mubr.bf16.gmra.mxu0 %v1936
    %v1972 = vpop.f32.mrf.mxu0
    %v1973 = vadd.f32 0.0, %v1972
    %v1974 = vpop.f32.mrf.mxu0
    %v1975 = vpop.f32.mrf.mxu0
    %v1976 = vadd.f32 0.0, %v1975
    %v1977 = vpop.f32.mrf.mxu0
    %1978 = vdwg.mxu0
    %v1979 = vld [vmem:[%s2 + $0xe0] sm:$0xff]
    %v1980 = vld [vmem:[%s2 + $0xe8] sm:$0xff]
    %v1981 = vmul.f32 %v1973, %v1979
    %v1982 = vmul.f32 %v1976, %v1980
    %v1983 = vpack.c.bf16 %v1982, %v1981
    %v1984 = vld [vmem:[%s1 + $0x158] sm:$0xf]
    %v1985 = vld [vmem:[%s1 + $0x15c] sm:$0xf]
    %v1986 = vld [vmem:[%s1 + $0x160] sm:$0xf]
    %v1987 = vld [vmem:[%s1 + $0x164] sm:$0xf]
    %v1992 = vunpack.c.l.b16 %v1984
    %v1993 = vunpack.c.l.b16 %v1985
    %v1994 = vunpack.c.l.b16 %v1986
    %v1995 = vunpack.c.l.b16 %v1987
    %v1996 = vpack.c.b16 %v1993, %v1992
    %v1997 = vpack.c.b16 %v1995, %v1994
    %v2001 = vsel %vm112, %v1983, 0
    %2003 = vmatprep.subr.bf16.mxu0 0
    %2004 = vmatpush1.bf16.msra.mxu0 0
    %2005 = vmatprep.subr.bf16.mxu0 0
    %2006 = vmatpush1.bf16.msra.mxu0 0
    %2007 = vmatprep.subr.bf16.mxu0 0
    %2008 = vmatpush1.bf16.msra.mxu0 0
    %2009 = vmatprep.subr.bf16.mxu0 0
    %2010 = vmatpush1.bf16.msra.mxu0 0
    %2011 = vmatprep.subr.bf16.mxu0 0
    %2012 = vmatpush1.bf16.msra.mxu0 0
    %2013 = vmatprep.subr.bf16.mxu0 0
    %2014 = vmatpush1.bf16.msra.mxu0 0
    %2015 = vmatprep.subr.bf16.mxu0 0
    %2016 = vmatpush1.bf16.msra.mxu0 %v1997
    %2017 = vmatprep.subr.bf16.mxu0 0
    %2018 = vmatpush1.bf16.msra.mxu0 %v1996
    %2019 = vmatprep.subr.bf16.mxu0 0
    %2020 = vmatpush2.bf16.msra.mxu0 0
    %2021 = vmatprep.subr.bf16.mxu0 0
    %2022 = vmatpush2.bf16.msra.mxu0 0
    %2023 = vmatprep.subr.bf16.mxu0 0
    %2024 = vmatpush2.bf16.msra.mxu0 0
    %2025 = vmatprep.subr.bf16.mxu0 0
    %2026 = vmatpush2.bf16.msra.mxu0 0
    %2027 = vmatprep.subr.bf16.mxu0 0
    %2028 = vmatpush2.bf16.msra.mxu0 0
    %2029 = vmatprep.subr.bf16.mxu0 0
    %2030 = vmatpush2.bf16.msra.mxu0 0
    %2031 = vmatprep.subr.bf16.mxu0 0
    %2032 = vmatpush2.bf16.msra.mxu0 0
    %2033 = vmatprep.subr.bf16.mxu0 0
    %2034 = vmatpush2.bf16.msra.mxu0 0
    %2035 = vmatprep.mubr.bf16.mxu0 0
    %2036 = vmatmul.mubr.bf16.gmra.mxu0 %v2001
    %v2037 = vpop.f32.mrf.mxu0
    %v2038 = vadd.f32 0.0, %v2037
    %v2039 = vpop.f32.mrf.mxu0
    %v2040 = vpop.f32.mrf.mxu0
    %v2041 = vadd.f32 0.0, %v2040
    %v2042 = vpop.f32.mrf.mxu0
    %2043 = vdwg.mxu0
    %v2044 = vld [vmem:[%s1 + $0x150] sm:$0x1]
    %v2045 = vpack.c.bf16 %v2041, %v2038
    %v2046 = vld [vmem:[%s2 + $0xf0] sm:$0x1]
    %v2047 = vlaneseq
    %v2048 = vshrl.u32 %v2047, 7
    %v2049 = vsub.s32 0, %v2048
    %v2050 = vrot.slane %v2046, %v2049
    %v2052 = vsel %vm436, %v2044, 0
    %2054 = vmatprep.subr.bf16.mxu0 0
    %2055 = vmatpush1.bf16.msra.mxu0 0
    %2056 = vmatprep.subr.bf16.mxu0 0
    %2057 = vmatpush1.bf16.msra.mxu0 0
    %2058 = vmatprep.subr.bf16.mxu0 0
    %2059 = vmatpush1.bf16.msra.mxu0 0
    %2060 = vmatprep.subr.bf16.mxu0 0
    %2061 = vmatpush1.bf16.msra.mxu0 0
    %2062 = vmatprep.subr.bf16.mxu0 0
    %2063 = vmatpush1.bf16.msra.mxu0 0
    %2064 = vmatprep.subr.bf16.mxu0 0
    %2065 = vmatpush1.bf16.msra.mxu0 0
    %2066 = vmatprep.subr.bf16.mxu0 0
    %2067 = vmatpush1.bf16.msra.mxu0 0
    %2068 = vmatprep.subr.bf16.mxu0 0
    %2069 = vmatpush1.bf16.msra.mxu0 %v2045
    %2070 = vmatprep.subr.bf16.mxu0 0
    %2071 = vmatpush2.bf16.msra.mxu0 0
    %2072 = vmatprep.subr.bf16.mxu0 0
    %2073 = vmatpush2.bf16.msra.mxu0 0
    %2074 = vmatprep.subr.bf16.mxu0 0
    %2075 = vmatpush2.bf16.msra.mxu0 0
    %2076 = vmatprep.subr.bf16.mxu0 0
    %2077 = vmatpush2.bf16.msra.mxu0 0
    %2078 = vmatprep.subr.bf16.mxu0 0
    %2079 = vmatpush2.bf16.msra.mxu0 0
    %2080 = vmatprep.subr.bf16.mxu0 0
    %2081 = vmatpush2.bf16.msra.mxu0 0
    %2082 = vmatprep.subr.bf16.mxu0 0
    %2083 = vmatpush2.bf16.msra.mxu0 0
    %2084 = vmatprep.subr.bf16.mxu0 0
    %2085 = vmatpush2.bf16.msra.mxu0 0
    %2086 = vmatprep.mubr.bf16.mxu0 0
    %2087 = vmatmul.mubr.bf16.gmra.mxu0 %v2052
    %v2088 = vpop.f32.mrf.mxu0
    %v2089 = vadd.f32 %v2050, %v2088
    %v2090 = vpop.f32.mrf.mxu0
    %v2091 = vpop.f32.mrf.mxu0
    %v2092 = vpop.f32.mrf.mxu0
    %2093 = vdwg.mxu0
    %vm2094 = vcmask 25600
    %2095 = vst.msk [vmem:[#allocation2] sm:$0x3] %vm2094, %v2089
    // Predicated region
    $region14: #{bert_class_forward.1} parent=1 // pred_check
      _
    $region15: #{bert_class_forward.1} parent=1 // pred_check_branch
      %2097 = sbr.rel (0) target = $region17
    $region16: #{bert_class_forward.1} parent=1 // pred_region
      %s2099 = ssub.s32 32, 32
      %2100 = vsyncadd [#allocation3], %s2099
      %s2102 = sshll.u32 [#allocation2], 4
      %s2103 = int_to_ptr.vmem [resolvable:$true] %s2102
      %2105 = dma.vmem_to_hbm [thread:$0]  %s2103, 32, %s3, [#allocation3]
    $region17: #{bert_class_forward.1} parent=1 // pred_fallthru
      _
    // Predicated region
    $region18: #{bert_class_forward.1} parent=1 // pred_check
      _
    $region19: #{bert_class_forward.1} parent=1 // pred_check_branch
      %2107 = sbr.rel (0) target = $region21
    $region20: #{bert_class_forward.1} parent=1 // pred_region
      %2108 = dma.done [#allocation3], 32
    $region21: #{bert_class_forward.1} parent=1 // pred_fallthru
      _
    %2109 = vsyncpa [#allocation3], 1

</llo_original>
